<compile_context>
chip_gen: v6e
topology: v6e:2x2x1
jax: 0.10.0
libtpu: 0.0.40
codegen_flags: <defaults>
</compile_context>

<pallas_src>
import math

import jax
import jax.numpy as jnp
from jax import lax
from jax.experimental import pallas as pl
from jax.experimental.pallas import tpu as pltpu

PAD_IDX = 1          # RoBERTa padding token id
LN_EPS = 1e-5        # RoBERTa layer_norm_eps
ROWS_PER_STEP = 512  # target Bt*S rows per grid step (fills the MXU on v6e/v7x)
MASK_NEG = -1e9      # finite mask bias (avoids -inf - -inf NaN corner case)


def _vmem_limit_bytes():
    """Generation-aware VMEM request: ~56 MiB on v7x, ~112 MiB on v5e/v6e."""
    try:
        cap = int(pltpu.get_tpu_info().vmem_capacity_bytes)
    except Exception:
        cap = 128 * 1024 * 1024
    return min((cap * 7) // 8, 112 * 1024 * 1024)


# ----------------------------------------------------------------------------
# Pallas kernel: one transformer encoder layer for a block of Bt sequences.
# ----------------------------------------------------------------------------
def make_layer_kernel(num_heads: int, head_dim: int, bt: int, seq: int,
                      d_model: int, d_ff: int):
    inv_sqrt2 = 1.0 / math.sqrt(2.0)
    dff_chunk = 1024 if (d_ff % 1024 == 0) else d_ff
    n_chunks = d_ff // dff_chunk

    def kernel(x_ref, bias_ref,
               wq_ref, bq_ref, wk_ref, bk_ref, wv_ref, bv_ref,
               wo_ref, bo_ref, g1_ref, b1_ref,
               wi_ref, bi_ref, wd_ref, bd_ref, g2_ref, b2_ref,
               out_ref, ctx_ref):
        Bt, S, D, H, dh = bt, seq, d_model, num_heads, head_dim

        x = x_ref[...]                          # (Bt, S, D) f32
        x2 = x.reshape(Bt * S, D)               # rows = tokens (f32 residual path)
        xb = x2.astype(jnp.bfloat16)            # bf16 matmul operand

        def layer_norm(v, g, b):
            mu = jnp.mean(v, axis=-1, keepdims=True)
            d = v - mu
            var = jnp.mean(d * d, axis=-1, keepdims=True)
            return d * lax.rsqrt(var + LN_EPS) * g + b

        # ---- fused full-width projections (lane-dense N = D on the MXU) ----
        # 1/sqrt(dh) is pre-folded into wq / bq at parameter-prep time.
        q = jnp.dot(xb, wq_ref[...], preferred_element_type=jnp.float32) + bq_ref[...]
        k = jnp.dot(xb, wk_ref[...], preferred_element_type=jnp.float32) + bk_ref[...]
        v = jnp.dot(xb, wv_ref[...], preferred_element_type=jnp.float32) + bv_ref[...]

        q3 = q.reshape(Bt, S, D).astype(jnp.bfloat16)
        k3 = k.reshape(Bt, S, D).astype(jnp.bfloat16)
        v3 = v.reshape(Bt, S, D).astype(jnp.bfloat16)

        bias = bias_ref[...]                            # (Bt, 1, S) additive mask bias
        bias_full = jnp.broadcast_to(bias, (Bt, S, S))  # hoisted out of the head loop

        # ---- self attention: per head, batched over the Bt sequences -------
        # Each head's context goes straight into the bf16 VMEM slab ctx_ref,
        # bounding live ranges and removing the old H-way concat.
        for h in range(H):
            lo, hi = h * dh, (h + 1) * dh
            qh = q3[:, :, lo:hi]                 # (Bt, S, dh)
            kh = k3[:, :, lo:hi]
            vh = v3[:, :, lo:hi]
            s = jnp.einsum('bqd,bkd->bqk', qh, kh,
                           preferred_element_type=jnp.float32)
            s = s + bias_full
            s = s - jnp.max(s, axis=-1, keepdims=True)
            p = jnp.exp(s)
            p = p * pl.reciprocal(jnp.sum(p, axis=-1, keepdims=True), approx=True)
            ctx_h = jnp.einsum('bqk,bkd->bqd', p.astype(jnp.bfloat16), vh,
                               preferred_element_type=jnp.float32)
            ctx_ref[:, :, lo:hi] = ctx_h.astype(jnp.bfloat16)

        ctx2 = ctx_ref[...].reshape(Bt * S, D)   # bf16, ready for the MXU

        # ---- attention output dense + residual + LayerNorm -----------------
        ao = jnp.dot(ctx2, wo_ref[...], preferred_element_type=jnp.float32) + bo_ref[...]
        ao = layer_norm(ao + x2, g1_ref[...], b1_ref[...])
        ao_b = ao.astype(jnp.bfloat16)

        # ---- feed forward, chunked over DFF (exact erf GELU = HF 'gelu') ---
        # Chunking caps the (rows, DFF) intermediate to (rows, dff_chunk).
        # TODO(synk): jax.nn.gelu(approximate=True) would move the activation
        # onto the EUP slot if the accuracy budget allows.
        ffo = jnp.zeros((Bt * S, D), jnp.float32)
        for c in range(n_chunks):
            clo, chi = c * dff_chunk, (c + 1) * dff_chunk
            hdn = jnp.dot(ao_b, wi_ref[:, clo:chi],
                          preferred_element_type=jnp.float32) + bi_ref[:, clo:chi]
            hdn = 0.5 * hdn * (1.0 + lax.erf(hdn * inv_sqrt2))
            ffo = ffo + jnp.dot(hdn.astype(jnp.bfloat16), wd_ref[clo:chi, :],
                                preferred_element_type=jnp.float32)
        ffo = ffo + bd_ref[...]
        y = layer_norm(ffo + ao, g2_ref[...], b2_ref[...])

        out_ref[...] = y.reshape(Bt, S, D).astype(out_ref.dtype)

    return kernel


_LAYER_PARAM_ORDER = ('wq', 'bq', 'wk', 'bk', 'wv', 'bv',
                      'wo', 'bo', 'g1', 'b1',
                      'wi', 'bi', 'wd', 'bd', 'g2', 'b2')


def run_layer(x, mask_bias, lp, num_heads, head_dim):
    """Run one encoder layer via pallas_call; grid tiles the batch by Bt."""
    B, S, D = x.shape
    bt = max(1, min(B, ROWS_PER_STEP // max(S, 1)))        # Bt*S ~ 512 rows per step
    if B >= 2:
        bt = min(bt, (B + 1) // 2)                         # >=2 grid steps (v7x 2 TCs)
    Bp = ((B + bt - 1) // bt) * bt
    if Bp != B:
        x = jnp.pad(x, ((0, Bp - B), (0, 0), (0, 0)))
        mask_bias = jnp.pad(mask_bias, ((0, Bp - B), (0, 0), (0, 0)))

    weights = [lp[k] for k in _LAYER_PARAM_ORDER]
    d_ff = lp['wi'].shape[1]
    kernel = make_layer_kernel(num_heads, head_dim, bt, S, D, d_ff)

    def rep_spec(arr):
        # Constant index_map weight block: single-buffer it (no re-fetch ever,
        # so the default second pipeline buffer would be wasted VMEM).
        n = arr.ndim
        idx = lambda b, n=n: (0,) * n
        try:
            return pl.BlockSpec(arr.shape, idx, pipeline_mode=pl.Buffered(1))
        except Exception:
            return pl.BlockSpec(arr.shape, idx)

    in_specs = ([pl.BlockSpec((bt, S, D), lambda b: (b, 0, 0)),
                 pl.BlockSpec((bt, 1, S), lambda b: (b, 0, 0))]
                + [rep_spec(w) for w in weights])

    out = pl.pallas_call(
        kernel,
        out_shape=jax.ShapeDtypeStruct((Bp, S, D), jnp.float32),
        grid=(Bp // bt,),
        in_specs=in_specs,
        out_specs=pl.BlockSpec((bt, S, D), lambda b: (b, 0, 0)),
        scratch_shapes=[pltpu.VMEM((bt, S, D), jnp.bfloat16)],   # ctx slab
        compiler_params=pltpu.CompilerParams(
            dimension_semantics=("parallel",),
            vmem_limit_bytes=_vmem_limit_bytes()),
    )(x, mask_bias, *weights)
    return out[:B]


# ----------------------------------------------------------------------------
# Plain-JAX glue: embeddings, prompt prepend, layer loop (matches the module).
# ----------------------------------------------------------------------------
def roberta_embed(tokens, params):
    mask = (tokens != PAD_IDX).astype(jnp.int32)
    # RoBERTa create_position_ids_from_input_ids
    pos_ids = jnp.cumsum(mask, axis=1) * mask + PAD_IDX
    e = (params['word_emb'][tokens]
         + params['pos_emb'][pos_ids]
         + params['type_emb'][0])                      # token_type_ids == 0
    mu = e.mean(-1, keepdims=True)
    var = ((e - mu) ** 2).mean(-1, keepdims=True)
    e = (e - mu) / jnp.sqrt(var + LN_EPS) * params['emb_ln_g'] + params['emb_ln_b']
    return e                                           # dropout: identity (eval)


def roberta_prompt_bottleneck_forward(text_tokens, attn_mask, params, *,
                                      L, num_heads, head_dim,
                                      deep=1, deep_replace_method='replace',
                                      add_cls_token_output=False):
    B = text_tokens.shape[0]
    prompts = jnp.broadcast_to(params['prompts'][None],
                               (B,) + params['prompts'].shape)   # (B, deep, L, D)

    x = roberta_embed(text_tokens, params)
    g = prompts[:, 0]
    x = jnp.concatenate([g, x], axis=1)
    attn_mask_full = jnp.concatenate(
        [jnp.ones((B, L), attn_mask.dtype), attn_mask], axis=-1)
    # get_extended_attention_mask: (1 - mask) * large_negative, shape (B,1,S)
    mask_bias = (1.0 - attn_mask_full.astype(jnp.float32))[:, None, :] * MASK_NEG

    for i, lp in enumerate(params['layers']):
        if i > 0 and i < deep:
            if deep_replace_method == 'replace':
                g = prompts[:, i]
            x = jnp.concatenate([g, x[:, L:, :]], axis=1)
        x = run_layer(x, mask_bias, lp, num_heads, head_dim)

    idx = L + 1 if add_cls_token_output else L
    return x[:, :idx, :]


# ----------------------------------------------------------------------------
# Deterministic synthetic parameter initialization.
# Matmul weights stored (in, out) in bf16; biases / LN params in f32.
# 1/sqrt(head_dim) is folded into wq/bq here (do the same when importing real
# RoBERTa checkpoints — it is a one-time constant transform).
# ----------------------------------------------------------------------------
def init_params(key, *, vocab, max_pos, d_model, num_heads, d_ff,
                n_layers, L, deep):
    head_dim = d_model // num_heads
    inv_sqrt_dh = 1.0 / math.sqrt(head_dim)
    keys = iter(jax.random.split(key, 16 + 16 * n_layers))

    def nrm(shape, scale=0.02):
        return jax.random.normal(next(keys), shape, jnp.float32) * scale

    params = {
        'word_emb': nrm((vocab, d_model)),
        'pos_emb': nrm((max_pos, d_model)),
        'type_emb': nrm((2, d_model)),
        'emb_ln_g': jnp.ones((1, d_model), jnp.float32),
        'emb_ln_b': jnp.zeros((1, d_model), jnp.float32),
    }
    # nn.init.xavier_uniform_ on (deep, L, d_model)
    fan_in, fan_out = L * d_model, deep * d_model
    a = math.sqrt(6.0 / (fan_in + fan_out))
    params['prompts'] = jax.random.uniform(
        next(keys), (deep, L, d_model), jnp.float32, -a, a)

    layers = []
    for _ in range(n_layers):
        layers.append({
            'wq': (nrm((d_model, d_model)) * inv_sqrt_dh).astype(jnp.bfloat16),
            'bq': nrm((1, d_model)) * inv_sqrt_dh,
            'wk': nrm((d_model, d_model)).astype(jnp.bfloat16),
            'bk': nrm((1, d_model)),
            'wv': nrm((d_model, d_model)).astype(jnp.bfloat16),
            'bv': nrm((1, d_model)),
            'wo': nrm((d_model, d_model)).astype(jnp.bfloat16),
            'bo': jnp.zeros((1, d_model), jnp.float32),
            'g1': jnp.ones((1, d_model), jnp.float32),
            'b1': jnp.zeros((1, d_model), jnp.float32),
            'wi': nrm((d_model, d_ff)).astype(jnp.bfloat16),
            'bi': jnp.zeros((1, d_ff), jnp.float32),
            'wd': nrm((d_ff, d_model)).astype(jnp.bfloat16),
            'bd': jnp.zeros((1, d_model), jnp.float32),
            'g2': jnp.ones((1, d_model), jnp.float32),
            'b2': jnp.zeros((1, d_model), jnp.float32),
        })
    params['layers'] = layers
    return params


# ----------------------------------------------------------------------------
if __name__ == "__main__":
    # Small synthetic config (stand-in for roberta-large):
    B, T = 2, 8              # batch, text tokens
    L = 8                    # prompt bottleneck length  -> S = L + T = 16
    D, H, DFF = 32, 4, 64    # hidden, heads, intermediate
    N_LAYERS, DEEP = 2, 1
    VOCAB, MAX_POS = 100, 64

    key = jax.random.PRNGKey(0)
    k_par, k_tok = jax.random.split(key)
    params = init_params(k_par, vocab=VOCAB, max_pos=MAX_POS, d_model=D,
                         num_heads=H, d_ff=DFF, n_layers=N_LAYERS,
                         L=L, deep=DEEP)

    text_tokens = jax.random.randint(k_tok, (B, T), 2, VOCAB, dtype=jnp.int32)
    attn_mask = jnp.ones((B, T), jnp.float32)
    # pad the tail of the second sequence
    text_tokens = text_tokens.at[1, -2:].set(PAD_IDX)
    attn_mask = attn_mask.at[1, -2:].set(0.0)

    out = roberta_prompt_bottleneck_forward(
        text_tokens, attn_mask, params,
        L=L, num_heads=H, head_dim=D // H,
        deep=DEEP, deep_replace_method='replace',
        add_cls_token_output=False)
    out = jax.block_until_ready(out)

    assert out.shape == (B, L, D), out.shape
    assert bool(jnp.all(jnp.isfinite(out)))
    print("KERNEL_OK")
</pallas_src>

<mosaic_0001>
module attributes {stable_mosaic.version = 11 : i64} {
  func.func @kernel(%arg0: i32, %arg1: memref<1x16x32xf32, #tpu.memory_space<vmem>>, %arg2: memref<1x1x16xf32, #tpu.memory_space<vmem>>, %arg3: memref<32x32xbf16, #tpu.memory_space<vmem>>, %arg4: memref<1x32xf32, #tpu.memory_space<vmem>>, %arg5: memref<32x32xbf16, #tpu.memory_space<vmem>>, %arg6: memref<1x32xf32, #tpu.memory_space<vmem>>, %arg7: memref<32x32xbf16, #tpu.memory_space<vmem>>, %arg8: memref<1x32xf32, #tpu.memory_space<vmem>>, %arg9: memref<32x32xbf16, #tpu.memory_space<vmem>>, %arg10: memref<1x32xf32, #tpu.memory_space<vmem>>, %arg11: memref<1x32xf32, #tpu.memory_space<vmem>>, %arg12: memref<1x32xf32, #tpu.memory_space<vmem>>, %arg13: memref<32x64xbf16, #tpu.memory_space<vmem>>, %arg14: memref<1x64xf32, #tpu.memory_space<vmem>>, %arg15: memref<64x32xbf16, #tpu.memory_space<vmem>>, %arg16: memref<1x32xf32, #tpu.memory_space<vmem>>, %arg17: memref<1x32xf32, #tpu.memory_space<vmem>>, %arg18: memref<1x32xf32, #tpu.memory_space<vmem>>, %arg19: memref<1x16x32xf32, #tpu.memory_space<vmem>>, %arg20: memref<1x16x32xbf16, #tpu.memory_space<vmem>>) attributes {dimension_semantics = [#tpu.dimension_semantics<parallel>], iteration_bounds = array<i64: 2>, scalar_prefetch = 0 : i64, scratch_operands = 1 : i64, tpu.core_type = #tpu.core_type<tc>, window_params = [{transform_indices = @transform_0, window_bounds = array<i64: 1, 16, 32>}, {transform_indices = @transform_1, window_bounds = array<i64: 1, 1, 16>}, {pipeline_mode = #tpu.pipeline_mode<synchronous>, transform_indices = @transform_2, window_bounds = array<i64: 32, 32>}, {pipeline_mode = #tpu.pipeline_mode<synchronous>, transform_indices = @transform_3, window_bounds = array<i64: 1, 32>}, {pipeline_mode = #tpu.pipeline_mode<synchronous>, transform_indices = @transform_4, window_bounds = array<i64: 32, 32>}, {pipeline_mode = #tpu.pipeline_mode<synchronous>, transform_indices = @transform_5, window_bounds = array<i64: 1, 32>}, {pipeline_mode = #tpu.pipeline_mode<synchronous>, transform_indices = @transform_6, window_bounds = array<i64: 32, 32>}, {pipeline_mode = #tpu.pipeline_mode<synchronous>, transform_indices = @transform_7, window_bounds = array<i64: 1, 32>}, {pipeline_mode = #tpu.pipeline_mode<synchronous>, transform_indices = @transform_8, window_bounds = array<i64: 32, 32>}, {pipeline_mode = #tpu.pipeline_mode<synchronous>, transform_indices = @transform_9, window_bounds = array<i64: 1, 32>}, {pipeline_mode = #tpu.pipeline_mode<synchronous>, transform_indices = @transform_10, window_bounds = array<i64: 1, 32>}, {pipeline_mode = #tpu.pipeline_mode<synchronous>, transform_indices = @transform_11, window_bounds = array<i64: 1, 32>}, {pipeline_mode = #tpu.pipeline_mode<synchronous>, transform_indices = @transform_12, window_bounds = array<i64: 32, 64>}, {pipeline_mode = #tpu.pipeline_mode<synchronous>, transform_indices = @transform_13, window_bounds = array<i64: 1, 64>}, {pipeline_mode = #tpu.pipeline_mode<synchronous>, transform_indices = @transform_14, window_bounds = array<i64: 64, 32>}, {pipeline_mode = #tpu.pipeline_mode<synchronous>, transform_indices = @transform_15, window_bounds = array<i64: 1, 32>}, {pipeline_mode = #tpu.pipeline_mode<synchronous>, transform_indices = @transform_16, window_bounds = array<i64: 1, 32>}, {pipeline_mode = #tpu.pipeline_mode<synchronous>, transform_indices = @transform_17, window_bounds = array<i64: 1, 32>}, {transform_indices = @transform_18, window_bounds = array<i64: 1, 16, 32>}]} {
    %c0 = arith.constant 0 : index
    %c0_0 = arith.constant 0 : index
    %c0_1 = arith.constant 0 : index
    %0 = vector.load %arg1[%c0, %c0_0, %c0_1] : memref<1x16x32xf32, #tpu.memory_space<vmem>>, vector<1x16x32xf32>
    %1 = vector.shape_cast %0 : vector<1x16x32xf32> to vector<16x32xf32>
    %2 = arith.truncf %1 : vector<16x32xf32> to vector<16x32xbf16>
    %c0_2 = arith.constant 0 : index
    %c0_3 = arith.constant 0 : index
    %3 = vector.load %arg3[%c0_2, %c0_3] : memref<32x32xbf16, #tpu.memory_space<vmem>>, vector<32x32xbf16>
    %cst = arith.constant dense<0.000000e+00> : vector<16x32xf32>
    %4 = tpu.matmul %2, %3, %cst {dimension_numbers = #tpu.dot_dimension_numbers<[1], [0], [0], [1], [0, 0, 1, 1], [], []>} : vector<16x32xbf16>, vector<32x32xbf16>, vector<16x32xf32> -> vector<16x32xf32>
    %c0_4 = arith.constant 0 : index
    %c0_5 = arith.constant 0 : index
    %5 = vector.load %arg4[%c0_4, %c0_5] : memref<1x32xf32, #tpu.memory_space<vmem>>, vector<1x32xf32>
    %6 = vector.broadcast %5 : vector<1x32xf32> to vector<16x32xf32>
    %7 = arith.addf %4, %6 : vector<16x32xf32>
    %c0_6 = arith.constant 0 : index
    %c0_7 = arith.constant 0 : index
    %8 = vector.load %arg5[%c0_6, %c0_7] : memref<32x32xbf16, #tpu.memory_space<vmem>>, vector<32x32xbf16>
    %cst_8 = arith.constant dense<0.000000e+00> : vector<16x32xf32>
    %9 = tpu.matmul %2, %8, %cst_8 {dimension_numbers = #tpu.dot_dimension_numbers<[1], [0], [0], [1], [0, 0, 1, 1], [], []>} : vector<16x32xbf16>, vector<32x32xbf16>, vector<16x32xf32> -> vector<16x32xf32>
    %c0_9 = arith.constant 0 : index
    %c0_10 = arith.constant 0 : index
    %10 = vector.load %arg6[%c0_9, %c0_10] : memref<1x32xf32, #tpu.memory_space<vmem>>, vector<1x32xf32>
    %11 = vector.broadcast %10 : vector<1x32xf32> to vector<16x32xf32>
    %12 = arith.addf %9, %11 : vector<16x32xf32>
    %c0_11 = arith.constant 0 : index
    %c0_12 = arith.constant 0 : index
    %13 = vector.load %arg7[%c0_11, %c0_12] : memref<32x32xbf16, #tpu.memory_space<vmem>>, vector<32x32xbf16>
    %cst_13 = arith.constant dense<0.000000e+00> : vector<16x32xf32>
    %14 = tpu.matmul %2, %13, %cst_13 {dimension_numbers = #tpu.dot_dimension_numbers<[1], [0], [0], [1], [0, 0, 1, 1], [], []>} : vector<16x32xbf16>, vector<32x32xbf16>, vector<16x32xf32> -> vector<16x32xf32>
    %c0_14 = arith.constant 0 : index
    %c0_15 = arith.constant 0 : index
    %15 = vector.load %arg8[%c0_14, %c0_15] : memref<1x32xf32, #tpu.memory_space<vmem>>, vector<1x32xf32>
    %16 = vector.broadcast %15 : vector<1x32xf32> to vector<16x32xf32>
    %17 = arith.addf %14, %16 : vector<16x32xf32>
    %18 = vector.shape_cast %7 : vector<16x32xf32> to vector<1x16x32xf32>
    %19 = arith.truncf %18 : vector<1x16x32xf32> to vector<1x16x32xbf16>
    %20 = vector.shape_cast %12 : vector<16x32xf32> to vector<1x16x32xf32>
    %21 = arith.truncf %20 : vector<1x16x32xf32> to vector<1x16x32xbf16>
    %22 = vector.shape_cast %17 : vector<16x32xf32> to vector<1x16x32xf32>
    %23 = arith.truncf %22 : vector<1x16x32xf32> to vector<1x16x32xbf16>
    %c0_16 = arith.constant 0 : index
    %c0_17 = arith.constant 0 : index
    %c0_18 = arith.constant 0 : index
    %24 = vector.load %arg2[%c0_16, %c0_17, %c0_18] : memref<1x1x16xf32, #tpu.memory_space<vmem>>, vector<1x1x16xf32>
    %25 = vector.shape_cast %24 : vector<1x1x16xf32> to vector<1x1x16xf32>
    %26 = vector.broadcast %25 : vector<1x1x16xf32> to vector<1x16x16xf32>
    %27 = vector.extract_strided_slice %19 {offsets = [0, 0, 0], sizes = [1, 16, 8], strides = [1, 1, 1]} : vector<1x16x32xbf16> to vector<1x16x8xbf16>
    %28 = vector.extract_strided_slice %21 {offsets = [0, 0, 0], sizes = [1, 16, 8], strides = [1, 1, 1]} : vector<1x16x32xbf16> to vector<1x16x8xbf16>
    %29 = vector.extract_strided_slice %23 {offsets = [0, 0, 0], sizes = [1, 16, 8], strides = [1, 1, 1]} : vector<1x16x32xbf16> to vector<1x16x8xbf16>
    "tpu.trace_start"() <{level = 10 : i32, message = "bqd,bkd->bqk"}> : () -> ()
    %cst_19 = arith.constant dense<0.000000e+00> : vector<1x16x16xf32>
    %30 = tpu.matmul %27, %28, %cst_19 {dimension_numbers = #tpu.dot_dimension_numbers<[2], [2], [1], [1], [0, 0, 0, 1, 1, 1], [0], [0]>} : vector<1x16x8xbf16>, vector<1x16x8xbf16>, vector<1x16x16xf32> -> vector<1x16x16xf32>
    "tpu.trace_stop"() : () -> ()
    %31 = arith.addf %30, %26 : vector<1x16x16xf32>
    %cst_20 = arith.constant dense<0xFF800000> : vector<1x16xf32>
    %32 = vector.multi_reduction <maximumf>, %31, %cst_20 [2] : vector<1x16x16xf32> to vector<1x16xf32>
    %33 = vector.shape_cast %32 : vector<1x16xf32> to vector<1x16x1xf32>
    %34 = vector.broadcast %33 : vector<1x16x1xf32> to vector<1x16x16xf32>
    %35 = arith.subf %31, %34 : vector<1x16x16xf32>
    %36 = math.exp %35 : vector<1x16x16xf32>
    %cst_21 = arith.constant dense<0.000000e+00> : vector<1x16xf32>
    %37 = vector.multi_reduction <add>, %36, %cst_21 [2] : vector<1x16x16xf32> to vector<1x16xf32>
    %38 = vector.shape_cast %37 : vector<1x16xf32> to vector<1x16x1xf32>
    %39 = tpu.reciprocal %38 {approx = true} : vector<1x16x1xf32> -> vector<1x16x1xf32>
    %40 = vector.broadcast %39 : vector<1x16x1xf32> to vector<1x16x16xf32>
    %41 = arith.mulf %36, %40 : vector<1x16x16xf32>
    %42 = arith.truncf %41 : vector<1x16x16xf32> to vector<1x16x16xbf16>
    "tpu.trace_start"() <{level = 10 : i32, message = "bqk,bkd->bqd"}> : () -> ()
    %cst_22 = arith.constant dense<0.000000e+00> : vector<1x16x8xf32>
    %43 = tpu.matmul %42, %29, %cst_22 {dimension_numbers = #tpu.dot_dimension_numbers<[2], [1], [1], [2], [0, 0, 0, 1, 1, 2], [0], [0]>} : vector<1x16x16xbf16>, vector<1x16x8xbf16>, vector<1x16x8xf32> -> vector<1x16x8xf32>
    "tpu.trace_stop"() : () -> ()
    %44 = arith.truncf %43 : vector<1x16x8xf32> to vector<1x16x8xbf16>
    %c0_23 = arith.constant 0 : index
    %c0_24 = arith.constant 0 : index
    %c0_25 = arith.constant 0 : index
    %45 = vector.load %arg20[%c0_23, %c0_24, %c0_25] : memref<1x16x32xbf16, #tpu.memory_space<vmem>>, vector<1x16x8xbf16>
    tpu.vector_store %arg20[%c0_23, %c0_24, %c0_25], %44 {strides = array<i32>} : memref<1x16x32xbf16, #tpu.memory_space<vmem>>, vector<1x16x8xbf16>,
    %46 = vector.extract_strided_slice %19 {offsets = [0, 0, 8], sizes = [1, 16, 8], strides = [1, 1, 1]} : vector<1x16x32xbf16> to vector<1x16x8xbf16>
    %47 = vector.extract_strided_slice %21 {offsets = [0, 0, 8], sizes = [1, 16, 8], strides = [1, 1, 1]} : vector<1x16x32xbf16> to vector<1x16x8xbf16>
    %48 = vector.extract_strided_slice %23 {offsets = [0, 0, 8], sizes = [1, 16, 8], strides = [1, 1, 1]} : vector<1x16x32xbf16> to vector<1x16x8xbf16>
    "tpu.trace_start"() <{level = 10 : i32, message = "bqd,bkd->bqk"}> : () -> ()
    %cst_26 = arith.constant dense<0.000000e+00> : vector<1x16x16xf32>
    %49 = tpu.matmul %46, %47, %cst_26 {dimension_numbers = #tpu.dot_dimension_numbers<[2], [2], [1], [1], [0, 0, 0, 1, 1, 1], [0], [0]>} : vector<1x16x8xbf16>, vector<1x16x8xbf16>, vector<1x16x16xf32> -> vector<1x16x16xf32>
    "tpu.trace_stop"() : () -> ()
    %50 = arith.addf %49, %26 : vector<1x16x16xf32>
    %cst_27 = arith.constant dense<0xFF800000> : vector<1x16xf32>
    %51 = vector.multi_reduction <maximumf>, %50, %cst_27 [2] : vector<1x16x16xf32> to vector<1x16xf32>
    %52 = vector.shape_cast %51 : vector<1x16xf32> to vector<1x16x1xf32>
    %53 = vector.broadcast %52 : vector<1x16x1xf32> to vector<1x16x16xf32>
    %54 = arith.subf %50, %53 : vector<1x16x16xf32>
    %55 = math.exp %54 : vector<1x16x16xf32>
    %cst_28 = arith.constant dense<0.000000e+00> : vector<1x16xf32>
    %56 = vector.multi_reduction <add>, %55, %cst_28 [2] : vector<1x16x16xf32> to vector<1x16xf32>
    %57 = vector.shape_cast %56 : vector<1x16xf32> to vector<1x16x1xf32>
    %58 = tpu.reciprocal %57 {approx = true} : vector<1x16x1xf32> -> vector<1x16x1xf32>
    %59 = vector.broadcast %58 : vector<1x16x1xf32> to vector<1x16x16xf32>
    %60 = arith.mulf %55, %59 : vector<1x16x16xf32>
    %61 = arith.truncf %60 : vector<1x16x16xf32> to vector<1x16x16xbf16>
    "tpu.trace_start"() <{level = 10 : i32, message = "bqk,bkd->bqd"}> : () -> ()
    %cst_29 = arith.constant dense<0.000000e+00> : vector<1x16x8xf32>
    %62 = tpu.matmul %61, %48, %cst_29 {dimension_numbers = #tpu.dot_dimension_numbers<[2], [1], [1], [2], [0, 0, 0, 1, 1, 2], [0], [0]>} : vector<1x16x16xbf16>, vector<1x16x8xbf16>, vector<1x16x8xf32> -> vector<1x16x8xf32>
    "tpu.trace_stop"() : () -> ()
    %63 = arith.truncf %62 : vector<1x16x8xf32> to vector<1x16x8xbf16>
    %c0_30 = arith.constant 0 : index
    %c0_31 = arith.constant 0 : index
    %c8 = arith.constant 8 : index
    %64 = vector.load %arg20[%c0_30, %c0_31, %c8] : memref<1x16x32xbf16, #tpu.memory_space<vmem>>, vector<1x16x8xbf16>
    tpu.vector_store %arg20[%c0_30, %c0_31, %c8], %63 {strides = array<i32>} : memref<1x16x32xbf16, #tpu.memory_space<vmem>>, vector<1x16x8xbf16>,
    %65 = vector.extract_strided_slice %19 {offsets = [0, 0, 16], sizes = [1, 16, 8], strides = [1, 1, 1]} : vector<1x16x32xbf16> to vector<1x16x8xbf16>
    %66 = vector.extract_strided_slice %21 {offsets = [0, 0, 16], sizes = [1, 16, 8], strides = [1, 1, 1]} : vector<1x16x32xbf16> to vector<1x16x8xbf16>
    %67 = vector.extract_strided_slice %23 {offsets = [0, 0, 16], sizes = [1, 16, 8], strides = [1, 1, 1]} : vector<1x16x32xbf16> to vector<1x16x8xbf16>
    "tpu.trace_start"() <{level = 10 : i32, message = "bqd,bkd->bqk"}> : () -> ()
    %cst_32 = arith.constant dense<0.000000e+00> : vector<1x16x16xf32>
    %68 = tpu.matmul %65, %66, %cst_32 {dimension_numbers = #tpu.dot_dimension_numbers<[2], [2], [1], [1], [0, 0, 0, 1, 1, 1], [0], [0]>} : vector<1x16x8xbf16>, vector<1x16x8xbf16>, vector<1x16x16xf32> -> vector<1x16x16xf32>
    "tpu.trace_stop"() : () -> ()
    %69 = arith.addf %68, %26 : vector<1x16x16xf32>
    %cst_33 = arith.constant dense<0xFF800000> : vector<1x16xf32>
    %70 = vector.multi_reduction <maximumf>, %69, %cst_33 [2] : vector<1x16x16xf32> to vector<1x16xf32>
    %71 = vector.shape_cast %70 : vector<1x16xf32> to vector<1x16x1xf32>
    %72 = vector.broadcast %71 : vector<1x16x1xf32> to vector<1x16x16xf32>
    %73 = arith.subf %69, %72 : vector<1x16x16xf32>
    %74 = math.exp %73 : vector<1x16x16xf32>
    %cst_34 = arith.constant dense<0.000000e+00> : vector<1x16xf32>
    %75 = vector.multi_reduction <add>, %74, %cst_34 [2] : vector<1x16x16xf32> to vector<1x16xf32>
    %76 = vector.shape_cast %75 : vector<1x16xf32> to vector<1x16x1xf32>
    %77 = tpu.reciprocal %76 {approx = true} : vector<1x16x1xf32> -> vector<1x16x1xf32>
    %78 = vector.broadcast %77 : vector<1x16x1xf32> to vector<1x16x16xf32>
    %79 = arith.mulf %74, %78 : vector<1x16x16xf32>
    %80 = arith.truncf %79 : vector<1x16x16xf32> to vector<1x16x16xbf16>
    "tpu.trace_start"() <{level = 10 : i32, message = "bqk,bkd->bqd"}> : () -> ()
    %cst_35 = arith.constant dense<0.000000e+00> : vector<1x16x8xf32>
    %81 = tpu.matmul %80, %67, %cst_35 {dimension_numbers = #tpu.dot_dimension_numbers<[2], [1], [1], [2], [0, 0, 0, 1, 1, 2], [0], [0]>} : vector<1x16x16xbf16>, vector<1x16x8xbf16>, vector<1x16x8xf32> -> vector<1x16x8xf32>
    "tpu.trace_stop"() : () -> ()
    %82 = arith.truncf %81 : vector<1x16x8xf32> to vector<1x16x8xbf16>
    %c0_36 = arith.constant 0 : index
    %c0_37 = arith.constant 0 : index
    %c16 = arith.constant 16 : index
    %83 = vector.load %arg20[%c0_36, %c0_37, %c16] : memref<1x16x32xbf16, #tpu.memory_space<vmem>>, vector<1x16x8xbf16>
    tpu.vector_store %arg20[%c0_36, %c0_37, %c16], %82 {strides = array<i32>} : memref<1x16x32xbf16, #tpu.memory_space<vmem>>, vector<1x16x8xbf16>,
    %84 = vector.extract_strided_slice %19 {offsets = [0, 0, 24], sizes = [1, 16, 8], strides = [1, 1, 1]} : vector<1x16x32xbf16> to vector<1x16x8xbf16>
    %85 = vector.extract_strided_slice %21 {offsets = [0, 0, 24], sizes = [1, 16, 8], strides = [1, 1, 1]} : vector<1x16x32xbf16> to vector<1x16x8xbf16>
    %86 = vector.extract_strided_slice %23 {offsets = [0, 0, 24], sizes = [1, 16, 8], strides = [1, 1, 1]} : vector<1x16x32xbf16> to vector<1x16x8xbf16>
    "tpu.trace_start"() <{level = 10 : i32, message = "bqd,bkd->bqk"}> : () -> ()
    %cst_38 = arith.constant dense<0.000000e+00> : vector<1x16x16xf32>
    %87 = tpu.matmul %84, %85, %cst_38 {dimension_numbers = #tpu.dot_dimension_numbers<[2], [2], [1], [1], [0, 0, 0, 1, 1, 1], [0], [0]>} : vector<1x16x8xbf16>, vector<1x16x8xbf16>, vector<1x16x16xf32> -> vector<1x16x16xf32>
    "tpu.trace_stop"() : () -> ()
    %88 = arith.addf %87, %26 : vector<1x16x16xf32>
    %cst_39 = arith.constant dense<0xFF800000> : vector<1x16xf32>
    %89 = vector.multi_reduction <maximumf>, %88, %cst_39 [2] : vector<1x16x16xf32> to vector<1x16xf32>
    %90 = vector.shape_cast %89 : vector<1x16xf32> to vector<1x16x1xf32>
    %91 = vector.broadcast %90 : vector<1x16x1xf32> to vector<1x16x16xf32>
    %92 = arith.subf %88, %91 : vector<1x16x16xf32>
    %93 = math.exp %92 : vector<1x16x16xf32>
    %cst_40 = arith.constant dense<0.000000e+00> : vector<1x16xf32>
    %94 = vector.multi_reduction <add>, %93, %cst_40 [2] : vector<1x16x16xf32> to vector<1x16xf32>
    %95 = vector.shape_cast %94 : vector<1x16xf32> to vector<1x16x1xf32>
    %96 = tpu.reciprocal %95 {approx = true} : vector<1x16x1xf32> -> vector<1x16x1xf32>
    %97 = vector.broadcast %96 : vector<1x16x1xf32> to vector<1x16x16xf32>
    %98 = arith.mulf %93, %97 : vector<1x16x16xf32>
    %99 = arith.truncf %98 : vector<1x16x16xf32> to vector<1x16x16xbf16>
    "tpu.trace_start"() <{level = 10 : i32, message = "bqk,bkd->bqd"}> : () -> ()
    %cst_41 = arith.constant dense<0.000000e+00> : vector<1x16x8xf32>
    %100 = tpu.matmul %99, %86, %cst_41 {dimension_numbers = #tpu.dot_dimension_numbers<[2], [1], [1], [2], [0, 0, 0, 1, 1, 2], [0], [0]>} : vector<1x16x16xbf16>, vector<1x16x8xbf16>, vector<1x16x8xf32> -> vector<1x16x8xf32>
    "tpu.trace_stop"() : () -> ()
    %101 = arith.truncf %100 : vector<1x16x8xf32> to vector<1x16x8xbf16>
    %c0_42 = arith.constant 0 : index
    %c0_43 = arith.constant 0 : index
    %c24 = arith.constant 24 : index
    %102 = vector.load %arg20[%c0_42, %c0_43, %c24] : memref<1x16x32xbf16, #tpu.memory_space<vmem>>, vector<1x16x8xbf16>
    tpu.vector_store %arg20[%c0_42, %c0_43, %c24], %101 {strides = array<i32>} : memref<1x16x32xbf16, #tpu.memory_space<vmem>>, vector<1x16x8xbf16>,
    %c0_44 = arith.constant 0 : index
    %c0_45 = arith.constant 0 : index
    %c0_46 = arith.constant 0 : index
    %103 = vector.load %arg20[%c0_44, %c0_45, %c0_46] : memref<1x16x32xbf16, #tpu.memory_space<vmem>>, vector<1x16x32xbf16>
    %104 = vector.shape_cast %103 : vector<1x16x32xbf16> to vector<16x32xbf16>
    %c0_47 = arith.constant 0 : index
    %c0_48 = arith.constant 0 : index
    %105 = vector.load %arg9[%c0_47, %c0_48] : memref<32x32xbf16, #tpu.memory_space<vmem>>, vector<32x32xbf16>
    %cst_49 = arith.constant dense<0.000000e+00> : vector<16x32xf32>
    %106 = tpu.matmul %104, %105, %cst_49 {dimension_numbers = #tpu.dot_dimension_numbers<[1], [0], [0], [1], [0, 0, 1, 1], [], []>} : vector<16x32xbf16>, vector<32x32xbf16>, vector<16x32xf32> -> vector<16x32xf32>
    %c0_50 = arith.constant 0 : index
    %c0_51 = arith.constant 0 : index
    %107 = vector.load %arg10[%c0_50, %c0_51] : memref<1x32xf32, #tpu.memory_space<vmem>>, vector<1x32xf32>
    %108 = vector.broadcast %107 : vector<1x32xf32> to vector<16x32xf32>
    %109 = arith.addf %106, %108 : vector<16x32xf32>
    %110 = arith.addf %109, %1 : vector<16x32xf32>
    %c0_52 = arith.constant 0 : index
    %c0_53 = arith.constant 0 : index
    %111 = vector.load %arg11[%c0_52, %c0_53] : memref<1x32xf32, #tpu.memory_space<vmem>>, vector<1x32xf32>
    %c0_54 = arith.constant 0 : index
    %c0_55 = arith.constant 0 : index
    %112 = vector.load %arg12[%c0_54, %c0_55] : memref<1x32xf32, #tpu.memory_space<vmem>>, vector<1x32xf32>
    %cst_56 = arith.constant dense<0.000000e+00> : vector<16xf32>
    %113 = vector.multi_reduction <add>, %110, %cst_56 [1] : vector<16x32xf32> to vector<16xf32>
    %114 = vector.shape_cast %113 : vector<16xf32> to vector<16x1xf32>
    %cst_57 = arith.constant 3.200000e+01 : f32
    %115 = vector.broadcast %cst_57 : f32 to vector<16x1xf32>
    %116 = arith.divf %114, %115 : vector<16x1xf32>
    %117 = vector.broadcast %116 : vector<16x1xf32> to vector<16x32xf32>
    %118 = arith.subf %110, %117 : vector<16x32xf32>
    %119 = arith.mulf %118, %118 : vector<16x32xf32>
    %cst_58 = arith.constant dense<0.000000e+00> : vector<16xf32>
    %120 = vector.multi_reduction <add>, %119, %cst_58 [1] : vector<16x32xf32> to vector<16xf32>
    %121 = vector.shape_cast %120 : vector<16xf32> to vector<16x1xf32>
    %cst_59 = arith.constant 3.200000e+01 : f32
    %122 = vector.broadcast %cst_59 : f32 to vector<16x1xf32>
    %123 = arith.divf %121, %122 : vector<16x1xf32>
    %cst_60 = arith.constant 9.99999974E-6 : f32
    %124 = vector.broadcast %cst_60 : f32 to vector<16x1xf32>
    %125 = arith.addf %123, %124 : vector<16x1xf32>
    %126 = math.rsqrt %125 : vector<16x1xf32>
    %127 = vector.broadcast %126 : vector<16x1xf32> to vector<16x32xf32>
    %128 = arith.mulf %118, %127 : vector<16x32xf32>
    %129 = vector.broadcast %111 : vector<1x32xf32> to vector<16x32xf32>
    %130 = arith.mulf %128, %129 : vector<16x32xf32>
    %131 = vector.broadcast %112 : vector<1x32xf32> to vector<16x32xf32>
    %132 = arith.addf %130, %131 : vector<16x32xf32>
    %133 = arith.truncf %132 : vector<16x32xf32> to vector<16x32xbf16>
    %cst_61 = arith.constant 0.000000e+00 : f32
    %134 = vector.broadcast %cst_61 : f32 to vector<16x32xf32>
    %c0_62 = arith.constant 0 : index
    %c0_63 = arith.constant 0 : index
    %135 = vector.load %arg13[%c0_62, %c0_63] : memref<32x64xbf16, #tpu.memory_space<vmem>>, vector<32x64xbf16>
    %cst_64 = arith.constant dense<0.000000e+00> : vector<16x64xf32>
    %136 = tpu.matmul %133, %135, %cst_64 {dimension_numbers = #tpu.dot_dimension_numbers<[1], [0], [0], [1], [0, 0, 1, 1], [], []>} : vector<16x32xbf16>, vector<32x64xbf16>, vector<16x64xf32> -> vector<16x64xf32>
    %c0_65 = arith.constant 0 : index
    %c0_66 = arith.constant 0 : index
    %137 = vector.load %arg14[%c0_65, %c0_66] : memref<1x64xf32, #tpu.memory_space<vmem>>, vector<1x64xf32>
    %138 = vector.broadcast %137 : vector<1x64xf32> to vector<16x64xf32>
    %139 = arith.addf %136, %138 : vector<16x64xf32>
    %cst_67 = arith.constant 5.000000e-01 : f32
    %140 = vector.broadcast %cst_67 : f32 to vector<16x64xf32>
    %141 = arith.mulf %140, %139 : vector<16x64xf32>
    %cst_68 = arith.constant 0.707106769 : f32
    %142 = vector.broadcast %cst_68 : f32 to vector<16x64xf32>
    %143 = arith.mulf %139, %142 : vector<16x64xf32>
    %144 = math.erf %143 : vector<16x64xf32>
    %cst_69 = arith.constant 1.000000e+00 : f32
    %145 = vector.broadcast %cst_69 : f32 to vector<16x64xf32>
    %146 = arith.addf %145, %144 : vector<16x64xf32>
    %147 = arith.mulf %141, %146 : vector<16x64xf32>
    %148 = arith.truncf %147 : vector<16x64xf32> to vector<16x64xbf16>
    %c0_70 = arith.constant 0 : index
    %c0_71 = arith.constant 0 : index
    %149 = vector.load %arg15[%c0_70, %c0_71] : memref<64x32xbf16, #tpu.memory_space<vmem>>, vector<64x32xbf16>
    %cst_72 = arith.constant dense<0.000000e+00> : vector<16x32xf32>
    %150 = tpu.matmul %148, %149, %cst_72 {dimension_numbers = #tpu.dot_dimension_numbers<[1], [0], [0], [1], [0, 0, 1, 1], [], []>} : vector<16x64xbf16>, vector<64x32xbf16>, vector<16x32xf32> -> vector<16x32xf32>
    %151 = arith.addf %134, %150 : vector<16x32xf32>
    %c0_73 = arith.constant 0 : index
    %c0_74 = arith.constant 0 : index
    %152 = vector.load %arg16[%c0_73, %c0_74] : memref<1x32xf32, #tpu.memory_space<vmem>>, vector<1x32xf32>
    %153 = vector.broadcast %152 : vector<1x32xf32> to vector<16x32xf32>
    %154 = arith.addf %151, %153 : vector<16x32xf32>
    %155 = arith.addf %154, %132 : vector<16x32xf32>
    %c0_75 = arith.constant 0 : index
    %c0_76 = arith.constant 0 : index
    %156 = vector.load %arg17[%c0_75, %c0_76] : memref<1x32xf32, #tpu.memory_space<vmem>>, vector<1x32xf32>
    %c0_77 = arith.constant 0 : index
    %c0_78 = arith.constant 0 : index
    %157 = vector.load %arg18[%c0_77, %c0_78] : memref<1x32xf32, #tpu.memory_space<vmem>>, vector<1x32xf32>
    %cst_79 = arith.constant dense<0.000000e+00> : vector<16xf32>
    %158 = vector.multi_reduction <add>, %155, %cst_79 [1] : vector<16x32xf32> to vector<16xf32>
    %159 = vector.shape_cast %158 : vector<16xf32> to vector<16x1xf32>
    %cst_80 = arith.constant 3.200000e+01 : f32
    %160 = vector.broadcast %cst_80 : f32 to vector<16x1xf32>
    %161 = arith.divf %159, %160 : vector<16x1xf32>
    %162 = vector.broadcast %161 : vector<16x1xf32> to vector<16x32xf32>
    %163 = arith.subf %155, %162 : vector<16x32xf32>
    %164 = arith.mulf %163, %163 : vector<16x32xf32>
    %cst_81 = arith.constant dense<0.000000e+00> : vector<16xf32>
    %165 = vector.multi_reduction <add>, %164, %cst_81 [1] : vector<16x32xf32> to vector<16xf32>
    %166 = vector.shape_cast %165 : vector<16xf32> to vector<16x1xf32>
    %cst_82 = arith.constant 3.200000e+01 : f32
    %167 = vector.broadcast %cst_82 : f32 to vector<16x1xf32>
    %168 = arith.divf %166, %167 : vector<16x1xf32>
    %cst_83 = arith.constant 9.99999974E-6 : f32
    %169 = vector.broadcast %cst_83 : f32 to vector<16x1xf32>
    %170 = arith.addf %168, %169 : vector<16x1xf32>
    %171 = math.rsqrt %170 : vector<16x1xf32>
    %172 = vector.broadcast %171 : vector<16x1xf32> to vector<16x32xf32>
    %173 = arith.mulf %163, %172 : vector<16x32xf32>
    %174 = vector.broadcast %156 : vector<1x32xf32> to vector<16x32xf32>
    %175 = arith.mulf %173, %174 : vector<16x32xf32>
    %176 = vector.broadcast %157 : vector<1x32xf32> to vector<16x32xf32>
    %177 = arith.addf %175, %176 : vector<16x32xf32>
    %178 = vector.shape_cast %177 : vector<16x32xf32> to vector<1x16x32xf32>
    %c0_84 = arith.constant 0 : index
    %c0_85 = arith.constant 0 : index
    %c0_86 = arith.constant 0 : index
    %179 = vector.load %arg19[%c0_84, %c0_85, %c0_86] : memref<1x16x32xf32, #tpu.memory_space<vmem>>, vector<1x16x32xf32>
    tpu.vector_store %arg19[%c0_84, %c0_85, %c0_86], %178 {strides = array<i32>} : memref<1x16x32xf32, #tpu.memory_space<vmem>>, vector<1x16x32xf32>,
    return
  }
  func.func @transform_0(%arg0: i32) -> (i32, i32, i32) {
    %c0_i32 = arith.constant 0 : i32
    %c0_i32_0 = arith.constant 0 : i32
    %c0_i32_1 = arith.constant 0 : i32
    return %arg0, %c0_i32, %c0_i32_0 : i32, i32, i32
  }
  func.func @transform_1(%arg0: i32) -> (i32, i32, i32) {
    %c0_i32 = arith.constant 0 : i32
    %c0_i32_0 = arith.constant 0 : i32
    %c0_i32_1 = arith.constant 0 : i32
    return %arg0, %c0_i32, %c0_i32_0 : i32, i32, i32
  }
  func.func @transform_2(%arg0: i32) -> (i32, i32) {
    %c0_i32 = arith.constant 0 : i32
    %c0_i32_0 = arith.constant 0 : i32
    %c0_i32_1 = arith.constant 0 : i32
    return %c0_i32, %c0_i32_0 : i32, i32
  }
  func.func @transform_3(%arg0: i32) -> (i32, i32) {
    %c0_i32 = arith.constant 0 : i32
    %c0_i32_0 = arith.constant 0 : i32
    %c0_i32_1 = arith.constant 0 : i32
    return %c0_i32, %c0_i32_0 : i32, i32
  }
  func.func @transform_4(%arg0: i32) -> (i32, i32) {
    %c0_i32 = arith.constant 0 : i32
    %c0_i32_0 = arith.constant 0 : i32
    %c0_i32_1 = arith.constant 0 : i32
    return %c0_i32, %c0_i32_0 : i32, i32
  }
  func.func @transform_5(%arg0: i32) -> (i32, i32) {
    %c0_i32 = arith.constant 0 : i32
    %c0_i32_0 = arith.constant 0 : i32
    %c0_i32_1 = arith.constant 0 : i32
    return %c0_i32, %c0_i32_0 : i32, i32
  }
  func.func @transform_6(%arg0: i32) -> (i32, i32) {
    %c0_i32 = arith.constant 0 : i32
    %c0_i32_0 = arith.constant 0 : i32
    %c0_i32_1 = arith.constant 0 : i32
    return %c0_i32, %c0_i32_0 : i32, i32
  }
  func.func @transform_7(%arg0: i32) -> (i32, i32) {
    %c0_i32 = arith.constant 0 : i32
    %c0_i32_0 = arith.constant 0 : i32
    %c0_i32_1 = arith.constant 0 : i32
    return %c0_i32, %c0_i32_0 : i32, i32
  }
  func.func @transform_8(%arg0: i32) -> (i32, i32) {
    %c0_i32 = arith.constant 0 : i32
    %c0_i32_0 = arith.constant 0 : i32
    %c0_i32_1 = arith.constant 0 : i32
    return %c0_i32, %c0_i32_0 : i32, i32
  }
  func.func @transform_9(%arg0: i32) -> (i32, i32) {
    %c0_i32 = arith.constant 0 : i32
    %c0_i32_0 = arith.constant 0 : i32
    %c0_i32_1 = arith.constant 0 : i32
    return %c0_i32, %c0_i32_0 : i32, i32
  }
  func.func @transform_10(%arg0: i32) -> (i32, i32) {
    %c0_i32 = arith.constant 0 : i32
    %c0_i32_0 = arith.constant 0 : i32
    %c0_i32_1 = arith.constant 0 : i32
    return %c0_i32, %c0_i32_0 : i32, i32
  }
  func.func @transform_11(%arg0: i32) -> (i32, i32) {
    %c0_i32 = arith.constant 0 : i32
    %c0_i32_0 = arith.constant 0 : i32
    %c0_i32_1 = arith.constant 0 : i32
    return %c0_i32, %c0_i32_0 : i32, i32
  }
  func.func @transform_12(%arg0: i32) -> (i32, i32) {
    %c0_i32 = arith.constant 0 : i32
    %c0_i32_0 = arith.constant 0 : i32
    %c0_i32_1 = arith.constant 0 : i32
    return %c0_i32, %c0_i32_0 : i32, i32
  }
  func.func @transform_13(%arg0: i32) -> (i32, i32) {
    %c0_i32 = arith.constant 0 : i32
    %c0_i32_0 = arith.constant 0 : i32
    %c0_i32_1 = arith.constant 0 : i32
    return %c0_i32, %c0_i32_0 : i32, i32
  }
  func.func @transform_14(%arg0: i32) -> (i32, i32) {
    %c0_i32 = arith.constant 0 : i32
    %c0_i32_0 = arith.constant 0 : i32
    %c0_i32_1 = arith.constant 0 : i32
    return %c0_i32, %c0_i32_0 : i32, i32
  }
  func.func @transform_15(%arg0: i32) -> (i32, i32) {
    %c0_i32 = arith.constant 0 : i32
    %c0_i32_0 = arith.constant 0 : i32
    %c0_i32_1 = arith.constant 0 : i32
    return %c0_i32, %c0_i32_0 : i32, i32
  }
  func.func @transform_16(%arg0: i32) -> (i32, i32) {
    %c0_i32 = arith.constant 0 : i32
    %c0_i32_0 = arith.constant 0 : i32
    %c0_i32_1 = arith.constant 0 : i32
    return %c0_i32, %c0_i32_0 : i32, i32
  }
  func.func @transform_17(%arg0: i32) -> (i32, i32) {
    %c0_i32 = arith.constant 0 : i32
    %c0_i32_0 = arith.constant 0 : i32
    %c0_i32_1 = arith.constant 0 : i32
    return %c0_i32, %c0_i32_0 : i32, i32
  }
  func.func @transform_18(%arg0: i32) -> (i32, i32, i32) {
    %c0_i32 = arith.constant 0 : i32
    %c0_i32_0 = arith.constant 0 : i32
    %c0_i32_1 = arith.constant 0 : i32
    return %arg0, %c0_i32, %c0_i32_0 : i32, i32, i32
  }
}

</mosaic_0001>

<llo_original>
// kernel: tpu_custom_call.1
$region0: #{tpu_custom_call.1}
  #allocation0 [shape = 'u32[]', space=smem, size = 0x4, offset = 0x4, fixed_abs, tag = 'smem constant byte address 0x4 - core index']
  #allocation1 [shape = 'u32[144,128]{1,0:T(1,128)}', space=vmem, size = 0x12000, scoped, tag = 'internal scratch']
  #allocation2 [shape = 'bf16[1,16,32]{2,1,0:T(8,128)(2,1)}', space=vmem, size = 0x1000, scoped, tag = 'scratch operand']
  %s0 = inlined_call_operand.vmem [shape: f32[2,16,32], index: 0, kind: input, shape index: {}]
  %s1 = inlined_call_operand.hbm [shape: f32[2,1,16], index: 1, kind: input, shape index: {}]
  %s2 = inlined_call_operand.vmem [shape: bf16[32,32], index: 2, kind: input, shape index: {}]
  %s3 = inlined_call_operand.vmem [shape: f32[1,32], index: 3, kind: input, shape index: {}]
  %s4 = inlined_call_operand.hbm [shape: bf16[32,32], index: 4, kind: input, shape index: {}]
  %s5 = inlined_call_operand.vmem [shape: f32[1,32], index: 5, kind: input, shape index: {}]
  %s6 = inlined_call_operand.hbm [shape: bf16[32,32], index: 6, kind: input, shape index: {}]
  %s7 = inlined_call_operand.vmem [shape: f32[1,32], index: 7, kind: input, shape index: {}]
  %s8 = inlined_call_operand.hbm [shape: bf16[32,32], index: 8, kind: input, shape index: {}]
  %s9 = inlined_call_operand.vmem [shape: f32[1,32], index: 9, kind: input, shape index: {}]
  %s10 = inlined_call_operand.vmem [shape: f32[1,32], index: 10, kind: input, shape index: {}]
  %s11 = inlined_call_operand.vmem [shape: f32[1,32], index: 11, kind: input, shape index: {}]
  %s12 = inlined_call_operand.hbm [shape: bf16[32,64], index: 12, kind: input, shape index: {}]
  %s13 = inlined_call_operand.vmem [shape: f32[1,64], index: 13, kind: input, shape index: {}]
  %s14 = inlined_call_operand.vmem [shape: bf16[64,32], index: 14, kind: input, shape index: {}]
  %s15 = inlined_call_operand.vmem [shape: f32[1,32], index: 15, kind: input, shape index: {}]
  %s16 = inlined_call_operand.vmem [shape: f32[1,32], index: 16, kind: input, shape index: {}]
  %s17 = inlined_call_operand.vmem [shape: f32[1,32], index: 17, kind: input, shape index: {}]
  %s18 = inlined_call_operand.hbm [shape: f32[2,16,32], index: 18, kind: output, shape index: {}]
  %s19 = sld [smem:[#allocation0]]
  $region125: #{tpu_custom_call.1} parent=0
    _
  %s21 = ssub.s32 1, %s19
  %s22 = scalar_select 0, %s21, %s19
  $region1: #{tpu_custom_call.1} parent=0
    #allocation3 [shape = 'u8[1024]{0}', space=vmem, size = 0x400, scoped, tag = 'input window, operand 1']
    #allocation4 [shape = 's32[2]{0}', space=sflag, size = 0x8, scoped, tag = 'scoped memory for tpu_custom_call.1']
    #allocation5 [shape = 's32[2]{0}', space=sflag, size = 0x8, scoped, tag = 'scoped memory for tpu_custom_call.1']
    #allocation6 [shape = 'u8[8192]{0}', space=vmem, size = 0x2000, scoped, tag = 'input window, operand 4, single buffered']
    #allocation7 [shape = 's32[1]{0}', space=sflag, size = 0x4, scoped, tag = 'scoped memory for tpu_custom_call.1']
    #allocation8 [shape = 'u8[8192]{0}', space=vmem, size = 0x2000, scoped, tag = 'input window, operand 6, single buffered']
    #allocation9 [shape = 'u8[8192]{0}', space=vmem, size = 0x2000, scoped, tag = 'input window, operand 8, single buffered']
    #allocation10 [shape = 's32[1]{0}', space=sflag, size = 0x4, scoped, tag = 'scoped memory for tpu_custom_call.1']
    #allocation11 [shape = 'u8[8192]{0}', space=vmem, size = 0x2000, scoped, tag = 'input window, operand 12, single buffered']
    #allocation12 [shape = 'u8[16384]{0}', space=vmem, size = 0x4000, scoped, tag = 'output window, operand 0']
    %23 = vsyncpa [#allocation4], 0
    %s24 = scalar_lea.sflag [#allocation4], 1
    %25 = vsyncpa %s24, 0
    %26 = vsyncpa [#allocation7], 0
    %27 = vsyncpa [#allocation10], 0
    %28 = vsyncpa [#allocation5], 0
    %s29 = scalar_lea.sflag [#allocation5], 1
    %30 = vsyncpa %s29, 0
    loop: start=0, step=1, limit=4
    $region2: #{tpu_custom_call.1} parent=1 // loop_pre_header
      _
    $region3: #{tpu_custom_call.1} parent=1 // loop_header
      %s32 = sphi 0, %s36
      %p33 = scmp.ge.s32.totalorder %s32, 4
      %s42 = sphi 0, %s44
      %s45 = sphi 0, %s42
      %s46 = sphi 0, %s45
      %s62 = sphi 0, %s46
      %s68 = sphi 0, %s70
      %s71 = sphi 0, %s68
      %s72 = sphi 0, %s71
      %s88 = sphi 0, %s72
      %s92 = sphi 0, %s92
      %s94 = sphi 0, %s92
      %s95 = sphi 0, %s94
      %s109 = sphi 0, %s95
      %s113 = sphi 0, %s113
      %s115 = sphi 0, %s113
      %s116 = sphi 0, %s115
      %s130 = sphi 0, %s116
      %s134 = sphi 0, %s134
      %s136 = sphi 0, %s134
      %s137 = sphi 0, %s136
      %s151 = sphi 0, %s137
      %s155 = sphi 0, %s155
      %s157 = sphi 0, %s155
      %s158 = sphi 0, %s157
      %s172 = sphi 0, %s158
      %s176 = sphi 0, %s176
      %s178 = sphi 0, %s176
      %s179 = sphi 0, %s178
      %s193 = sphi 0, %s179
      %s197 = sphi 0, %s197
      %s199 = sphi 0, %s197
      %s200 = sphi 0, %s199
      %s214 = sphi 0, %s200
      %s218 = sphi 0, %s218
      %s220 = sphi 0, %s218
      %s221 = sphi 0, %s220
      %s235 = sphi 0, %s221
      %s239 = sphi 0, %s239
      %s241 = sphi 0, %s239
      %s242 = sphi 0, %s241
      %s256 = sphi 0, %s242
      %s260 = sphi 0, %s260
      %s262 = sphi 0, %s260
      %s263 = sphi 0, %s262
      %s277 = sphi 0, %s263
      %s281 = sphi 0, %s281
      %s283 = sphi 0, %s281
      %s284 = sphi 0, %s283
      %s298 = sphi 0, %s284
      %s302 = sphi 0, %s302
      %s304 = sphi 0, %s302
      %s305 = sphi 0, %s304
      %s319 = sphi 0, %s305
      %s323 = sphi 0, %s323
      %s325 = sphi 0, %s323
      %s326 = sphi 0, %s325
      %s340 = sphi 0, %s326
      %s344 = sphi 0, %s344
      %s346 = sphi 0, %s344
      %s347 = sphi 0, %s346
      %s361 = sphi 0, %s347
      %s365 = sphi 0, %s365
      %s367 = sphi 0, %s365
      %s368 = sphi 0, %s367
      %s382 = sphi 0, %s368
      %s386 = sphi 0, %s386
      %s388 = sphi 0, %s386
      %s389 = sphi 0, %s388
      %s403 = sphi 0, %s389
      %s407 = sphi 0, %s407
      %s409 = sphi 0, %s407
      %s410 = sphi 0, %s409
      %s424 = sphi 0, %s410
      %s430 = sphi 0, %s432
      %s433 = sphi 0, %s430
      %s434 = sphi 0, %s433
      %s450 = sphi 0, %s434
    $region4: #{tpu_custom_call.1} parent=1 // loop_header_branch
      %35 = sbr.rel (%p33) target = $region8
    $region5: #{tpu_custom_call.1} parent=1 // loop_body
      %s37 = ssub.s32 %s32, 1
      %s38 = ssub.s32 %s32, 2
      %s39 = sadd.s32 %s32, 1
      %s40 = ssub.s32 %s32, %s39
      %p41 = scmp.eq.s32.totalorder %s40, 0
      %s43 = sadd.s32 %s42, 1
      %s44 = scalar_select %p41, %s42, %s43
      %p47 = pneg %p41
      %p48 = scmp.eq.s32.totalorder %s32, 1
      %p49 = por %p47, %p48
      %p50 = scmp.ne.s32.totalorder %s42, %s45
      %p51 = scmp.eq.s32.totalorder %s32, 0
      %p52 = por %p50, %p51
      %p53 = scmp.ne.s32.totalorder %s42, %s45
      %p54 = scmp.eq.s32.totalorder %s37, 1
      %p55 = por %p53, %p54
      %p56 = scmp.ne.s32.totalorder %s45, %s46
      %p57 = scmp.eq.s32.totalorder %s37, 0
      %p58 = por %p56, %p57
      %p59 = scmp.ne.s32.totalorder %s45, %s46
      %p60 = scmp.eq.s32.totalorder %s38, 1
      %p61 = por %p59, %p60
      %p63 = scmp.ne.s32.totalorder %s46, %s62
      %p64 = scmp.eq.s32.totalorder %s38, 0
      %p65 = por %p63, %p64
      %s66 = ssub.s32 %s32, %s39
      %p67 = scmp.eq.s32.totalorder %s66, 0
      %s69 = sadd.s32 %s68, 1
      %s70 = scalar_select %p67, %s68, %s69
      %p73 = pneg %p67
      %p74 = scmp.eq.s32.totalorder %s32, 1
      %p75 = por %p73, %p74
      %p76 = scmp.ne.s32.totalorder %s68, %s71
      %p77 = scmp.eq.s32.totalorder %s32, 0
      %p78 = por %p76, %p77
      %p79 = scmp.ne.s32.totalorder %s68, %s71
      %p80 = scmp.eq.s32.totalorder %s37, 1
      %p81 = por %p79, %p80
      %p82 = scmp.ne.s32.totalorder %s71, %s72
      %p83 = scmp.eq.s32.totalorder %s37, 0
      %p84 = por %p82, %p83
      %p85 = scmp.ne.s32.totalorder %s71, %s72
      %p86 = scmp.eq.s32.totalorder %s38, 1
      %p87 = por %p85, %p86
      %p89 = scmp.ne.s32.totalorder %s72, %s88
      %p90 = scmp.eq.s32.totalorder %s38, 0
      %p91 = por %p89, %p90
      %s93 = sadd.s32 %s92, 1
      %p96 = scmp.eq.s32.totalorder %s32, 1
      %p97 = scmp.ne.s32.totalorder %s92, %s94
      %p98 = scmp.eq.s32.totalorder %s32, 0
      %p99 = por %p97, %p98
      %p100 = scmp.ne.s32.totalorder %s92, %s94
      %p101 = scmp.eq.s32.totalorder %s37, 1
      %p102 = por %p100, %p101
      %p103 = scmp.ne.s32.totalorder %s94, %s95
      %p104 = scmp.eq.s32.totalorder %s37, 0
      %p105 = por %p103, %p104
      %p106 = scmp.ne.s32.totalorder %s94, %s95
      %p107 = scmp.eq.s32.totalorder %s38, 1
      %p108 = por %p106, %p107
      %p110 = scmp.ne.s32.totalorder %s95, %s109
      %p111 = scmp.eq.s32.totalorder %s38, 0
      %p112 = por %p110, %p111
      %s114 = sadd.s32 %s113, 1
      %p117 = scmp.eq.s32.totalorder %s32, 1
      %p118 = scmp.ne.s32.totalorder %s113, %s115
      %p119 = scmp.eq.s32.totalorder %s32, 0
      %p120 = por %p118, %p119
      %p121 = scmp.ne.s32.totalorder %s113, %s115
      %p122 = scmp.eq.s32.totalorder %s37, 1
      %p123 = por %p121, %p122
      %p124 = scmp.ne.s32.totalorder %s115, %s116
      %p125 = scmp.eq.s32.totalorder %s37, 0
      %p126 = por %p124, %p125
      %p127 = scmp.ne.s32.totalorder %s115, %s116
      %p128 = scmp.eq.s32.totalorder %s38, 1
      %p129 = por %p127, %p128
      %p131 = scmp.ne.s32.totalorder %s116, %s130
      %p132 = scmp.eq.s32.totalorder %s38, 0
      %p133 = por %p131, %p132
      %s135 = sadd.s32 %s134, 1
      %p138 = scmp.eq.s32.totalorder %s32, 1
      %p139 = scmp.ne.s32.totalorder %s134, %s136
      %p140 = scmp.eq.s32.totalorder %s32, 0
      %p141 = por %p139, %p140
      %p142 = scmp.ne.s32.totalorder %s134, %s136
      %p143 = scmp.eq.s32.totalorder %s37, 1
      %p144 = por %p142, %p143
      %p145 = scmp.ne.s32.totalorder %s136, %s137
      %p146 = scmp.eq.s32.totalorder %s37, 0
      %p147 = por %p145, %p146
      %p148 = scmp.ne.s32.totalorder %s136, %s137
      %p149 = scmp.eq.s32.totalorder %s38, 1
      %p150 = por %p148, %p149
      %p152 = scmp.ne.s32.totalorder %s137, %s151
      %p153 = scmp.eq.s32.totalorder %s38, 0
      %p154 = por %p152, %p153
      %s156 = sadd.s32 %s155, 1
      %p159 = scmp.eq.s32.totalorder %s32, 1
      %p160 = scmp.ne.s32.totalorder %s155, %s157
      %p161 = scmp.eq.s32.totalorder %s32, 0
      %p162 = por %p160, %p161
      %p163 = scmp.ne.s32.totalorder %s155, %s157
      %p164 = scmp.eq.s32.totalorder %s37, 1
      %p165 = por %p163, %p164
      %p166 = scmp.ne.s32.totalorder %s157, %s158
      %p167 = scmp.eq.s32.totalorder %s37, 0
      %p168 = por %p166, %p167
      %p169 = scmp.ne.s32.totalorder %s157, %s158
      %p170 = scmp.eq.s32.totalorder %s38, 1
      %p171 = por %p169, %p170
      %p173 = scmp.ne.s32.totalorder %s158, %s172
      %p174 = scmp.eq.s32.totalorder %s38, 0
      %p175 = por %p173, %p174
      %s177 = sadd.s32 %s176, 1
      %p180 = scmp.eq.s32.totalorder %s32, 1
      %p181 = scmp.ne.s32.totalorder %s176, %s178
      %p182 = scmp.eq.s32.totalorder %s32, 0
      %p183 = por %p181, %p182
      %p184 = scmp.ne.s32.totalorder %s176, %s178
      %p185 = scmp.eq.s32.totalorder %s37, 1
      %p186 = por %p184, %p185
      %p187 = scmp.ne.s32.totalorder %s178, %s179
      %p188 = scmp.eq.s32.totalorder %s37, 0
      %p189 = por %p187, %p188
      %p190 = scmp.ne.s32.totalorder %s178, %s179
      %p191 = scmp.eq.s32.totalorder %s38, 1
      %p192 = por %p190, %p191
      %p194 = scmp.ne.s32.totalorder %s179, %s193
      %p195 = scmp.eq.s32.totalorder %s38, 0
      %p196 = por %p194, %p195
      %s198 = sadd.s32 %s197, 1
      %p201 = scmp.eq.s32.totalorder %s32, 1
      %p202 = scmp.ne.s32.totalorder %s197, %s199
      %p203 = scmp.eq.s32.totalorder %s32, 0
      %p204 = por %p202, %p203
      %p205 = scmp.ne.s32.totalorder %s197, %s199
      %p206 = scmp.eq.s32.totalorder %s37, 1
      %p207 = por %p205, %p206
      %p208 = scmp.ne.s32.totalorder %s199, %s200
      %p209 = scmp.eq.s32.totalorder %s37, 0
      %p210 = por %p208, %p209
      %p211 = scmp.ne.s32.totalorder %s199, %s200
      %p212 = scmp.eq.s32.totalorder %s38, 1
      %p213 = por %p211, %p212
      %p215 = scmp.ne.s32.totalorder %s200, %s214
      %p216 = scmp.eq.s32.totalorder %s38, 0
      %p217 = por %p215, %p216
      %s219 = sadd.s32 %s218, 1
      %p222 = scmp.eq.s32.totalorder %s32, 1
      %p223 = scmp.ne.s32.totalorder %s218, %s220
      %p224 = scmp.eq.s32.totalorder %s32, 0
      %p225 = por %p223, %p224
      %p226 = scmp.ne.s32.totalorder %s218, %s220
      %p227 = scmp.eq.s32.totalorder %s37, 1
      %p228 = por %p226, %p227
      %p229 = scmp.ne.s32.totalorder %s220, %s221
      %p230 = scmp.eq.s32.totalorder %s37, 0
      %p231 = por %p229, %p230
      %p232 = scmp.ne.s32.totalorder %s220, %s221
      %p233 = scmp.eq.s32.totalorder %s38, 1
      %p234 = por %p232, %p233
      %p236 = scmp.ne.s32.totalorder %s221, %s235
      %p237 = scmp.eq.s32.totalorder %s38, 0
      %p238 = por %p236, %p237
      %s240 = sadd.s32 %s239, 1
      %p243 = scmp.eq.s32.totalorder %s32, 1
      %p244 = scmp.ne.s32.totalorder %s239, %s241
      %p245 = scmp.eq.s32.totalorder %s32, 0
      %p246 = por %p244, %p245
      %p247 = scmp.ne.s32.totalorder %s239, %s241
      %p248 = scmp.eq.s32.totalorder %s37, 1
      %p249 = por %p247, %p248
      %p250 = scmp.ne.s32.totalorder %s241, %s242
      %p251 = scmp.eq.s32.totalorder %s37, 0
      %p252 = por %p250, %p251
      %p253 = scmp.ne.s32.totalorder %s241, %s242
      %p254 = scmp.eq.s32.totalorder %s38, 1
      %p255 = por %p253, %p254
      %p257 = scmp.ne.s32.totalorder %s242, %s256
      %p258 = scmp.eq.s32.totalorder %s38, 0
      %p259 = por %p257, %p258
      %s261 = sadd.s32 %s260, 1
      %p264 = scmp.eq.s32.totalorder %s32, 1
      %p265 = scmp.ne.s32.totalorder %s260, %s262
      %p266 = scmp.eq.s32.totalorder %s32, 0
      %p267 = por %p265, %p266
      %p268 = scmp.ne.s32.totalorder %s260, %s262
      %p269 = scmp.eq.s32.totalorder %s37, 1
      %p270 = por %p268, %p269
      %p271 = scmp.ne.s32.totalorder %s262, %s263
      %p272 = scmp.eq.s32.totalorder %s37, 0
      %p273 = por %p271, %p272
      %p274 = scmp.ne.s32.totalorder %s262, %s263
      %p275 = scmp.eq.s32.totalorder %s38, 1
      %p276 = por %p274, %p275
      %p278 = scmp.ne.s32.totalorder %s263, %s277
      %p279 = scmp.eq.s32.totalorder %s38, 0
      %p280 = por %p278, %p279
      %s282 = sadd.s32 %s281, 1
      %p285 = scmp.eq.s32.totalorder %s32, 1
      %p286 = scmp.ne.s32.totalorder %s281, %s283
      %p287 = scmp.eq.s32.totalorder %s32, 0
      %p288 = por %p286, %p287
      %p289 = scmp.ne.s32.totalorder %s281, %s283
      %p290 = scmp.eq.s32.totalorder %s37, 1
      %p291 = por %p289, %p290
      %p292 = scmp.ne.s32.totalorder %s283, %s284
      %p293 = scmp.eq.s32.totalorder %s37, 0
      %p294 = por %p292, %p293
      %p295 = scmp.ne.s32.totalorder %s283, %s284
      %p296 = scmp.eq.s32.totalorder %s38, 1
      %p297 = por %p295, %p296
      %p299 = scmp.ne.s32.totalorder %s284, %s298
      %p300 = scmp.eq.s32.totalorder %s38, 0
      %p301 = por %p299, %p300
      %s303 = sadd.s32 %s302, 1
      %p306 = scmp.eq.s32.totalorder %s32, 1
      %p307 = scmp.ne.s32.totalorder %s302, %s304
      %p308 = scmp.eq.s32.totalorder %s32, 0
      %p309 = por %p307, %p308
      %p310 = scmp.ne.s32.totalorder %s302, %s304
      %p311 = scmp.eq.s32.totalorder %s37, 1
      %p312 = por %p310, %p311
      %p313 = scmp.ne.s32.totalorder %s304, %s305
      %p314 = scmp.eq.s32.totalorder %s37, 0
      %p315 = por %p313, %p314
      %p316 = scmp.ne.s32.totalorder %s304, %s305
      %p317 = scmp.eq.s32.totalorder %s38, 1
      %p318 = por %p316, %p317
      %p320 = scmp.ne.s32.totalorder %s305, %s319
      %p321 = scmp.eq.s32.totalorder %s38, 0
      %p322 = por %p320, %p321
      %s324 = sadd.s32 %s323, 1
      %p327 = scmp.eq.s32.totalorder %s32, 1
      %p328 = scmp.ne.s32.totalorder %s323, %s325
      %p329 = scmp.eq.s32.totalorder %s32, 0
      %p330 = por %p328, %p329
      %p331 = scmp.ne.s32.totalorder %s323, %s325
      %p332 = scmp.eq.s32.totalorder %s37, 1
      %p333 = por %p331, %p332
      %p334 = scmp.ne.s32.totalorder %s325, %s326
      %p335 = scmp.eq.s32.totalorder %s37, 0
      %p336 = por %p334, %p335
      %p337 = scmp.ne.s32.totalorder %s325, %s326
      %p338 = scmp.eq.s32.totalorder %s38, 1
      %p339 = por %p337, %p338
      %p341 = scmp.ne.s32.totalorder %s326, %s340
      %p342 = scmp.eq.s32.totalorder %s38, 0
      %p343 = por %p341, %p342
      %s345 = sadd.s32 %s344, 1
      %p348 = scmp.eq.s32.totalorder %s32, 1
      %p349 = scmp.ne.s32.totalorder %s344, %s346
      %p350 = scmp.eq.s32.totalorder %s32, 0
      %p351 = por %p349, %p350
      %p352 = scmp.ne.s32.totalorder %s344, %s346
      %p353 = scmp.eq.s32.totalorder %s37, 1
      %p354 = por %p352, %p353
      %p355 = scmp.ne.s32.totalorder %s346, %s347
      %p356 = scmp.eq.s32.totalorder %s37, 0
      %p357 = por %p355, %p356
      %p358 = scmp.ne.s32.totalorder %s346, %s347
      %p359 = scmp.eq.s32.totalorder %s38, 1
      %p360 = por %p358, %p359
      %p362 = scmp.ne.s32.totalorder %s347, %s361
      %p363 = scmp.eq.s32.totalorder %s38, 0
      %p364 = por %p362, %p363
      %s366 = sadd.s32 %s365, 1
      %p369 = scmp.eq.s32.totalorder %s32, 1
      %p370 = scmp.ne.s32.totalorder %s365, %s367
      %p371 = scmp.eq.s32.totalorder %s32, 0
      %p372 = por %p370, %p371
      %p373 = scmp.ne.s32.totalorder %s365, %s367
      %p374 = scmp.eq.s32.totalorder %s37, 1
      %p375 = por %p373, %p374
      %p376 = scmp.ne.s32.totalorder %s367, %s368
      %p377 = scmp.eq.s32.totalorder %s37, 0
      %p378 = por %p376, %p377
      %p379 = scmp.ne.s32.totalorder %s367, %s368
      %p380 = scmp.eq.s32.totalorder %s38, 1
      %p381 = por %p379, %p380
      %p383 = scmp.ne.s32.totalorder %s368, %s382
      %p384 = scmp.eq.s32.totalorder %s38, 0
      %p385 = por %p383, %p384
      %s387 = sadd.s32 %s386, 1
      %p390 = scmp.eq.s32.totalorder %s32, 1
      %p391 = scmp.ne.s32.totalorder %s386, %s388
      %p392 = scmp.eq.s32.totalorder %s32, 0
      %p393 = por %p391, %p392
      %p394 = scmp.ne.s32.totalorder %s386, %s388
      %p395 = scmp.eq.s32.totalorder %s37, 1
      %p396 = por %p394, %p395
      %p397 = scmp.ne.s32.totalorder %s388, %s389
      %p398 = scmp.eq.s32.totalorder %s37, 0
      %p399 = por %p397, %p398
      %p400 = scmp.ne.s32.totalorder %s388, %s389
      %p401 = scmp.eq.s32.totalorder %s38, 1
      %p402 = por %p400, %p401
      %p404 = scmp.ne.s32.totalorder %s389, %s403
      %p405 = scmp.eq.s32.totalorder %s38, 0
      %p406 = por %p404, %p405
      %s408 = sadd.s32 %s407, 1
      %p411 = scmp.eq.s32.totalorder %s32, 1
      %p412 = scmp.ne.s32.totalorder %s407, %s409
      %p413 = scmp.eq.s32.totalorder %s32, 0
      %p414 = por %p412, %p413
      %p415 = scmp.ne.s32.totalorder %s407, %s409
      %p416 = scmp.eq.s32.totalorder %s37, 1
      %p417 = por %p415, %p416
      %p418 = scmp.ne.s32.totalorder %s409, %s410
      %p419 = scmp.eq.s32.totalorder %s37, 0
      %p420 = por %p418, %p419
      %p421 = scmp.ne.s32.totalorder %s409, %s410
      %p422 = scmp.eq.s32.totalorder %s38, 1
      %p423 = por %p421, %p422
      %p425 = scmp.ne.s32.totalorder %s410, %s424
      %p426 = scmp.eq.s32.totalorder %s38, 0
      %p427 = por %p425, %p426
      %s428 = ssub.s32 %s32, %s39
      %p429 = scmp.eq.s32.totalorder %s428, 0
      %s431 = sadd.s32 %s430, 1
      %s432 = scalar_select %p429, %s430, %s431
      %p435 = pneg %p429
      %p436 = scmp.eq.s32.totalorder %s32, 1
      %p437 = por %p435, %p436
      %p438 = scmp.ne.s32.totalorder %s430, %s433
      %p439 = scmp.eq.s32.totalorder %s32, 0
      %p440 = por %p438, %p439
      %p441 = scmp.ne.s32.totalorder %s430, %s433
      %p442 = scmp.eq.s32.totalorder %s37, 1
      %p443 = por %p441, %p442
      %p444 = scmp.ne.s32.totalorder %s433, %s434
      %p445 = scmp.eq.s32.totalorder %s37, 0
      %p446 = por %p444, %p445
      %p447 = scmp.ne.s32.totalorder %s433, %s434
      %p448 = scmp.eq.s32.totalorder %s38, 1
      %p449 = por %p447, %p448
      %p451 = scmp.ne.s32.totalorder %s434, %s450
      %p452 = scmp.eq.s32.totalorder %s38, 0
      %p453 = por %p451, %p452
      %p454 = scmp.le.s32.totalorder 1, %s32
      %p455 = scmp.lt.s32.totalorder %s32, 3
      %p456 = pnand %p454, %p455
      %p457 = pneg %p456
      // Predicated region
      $region9: #{tpu_custom_call.1} parent=5 // pred_check
        _
      $region10: #{tpu_custom_call.1} parent=5 // pred_check_branch
        %459 = sbr.rel (%p456) target = $region12
      $region11: #{tpu_custom_call.1} parent=5 // pred_region
        %s460 = ssub.s32 %s32, 1
        // Predicated region
        $region13: #{tpu_custom_call.1} parent=11 // pred_check
          %p461 = pneg %p105
        $region14: #{tpu_custom_call.1} parent=11 // pred_check_branch
          %463 = sbr.rel (%p461) target = $region16
        $region15: #{tpu_custom_call.1} parent=11 // pred_region
          _
        $region16: #{tpu_custom_call.1} parent=11 // pred_fallthru
          _
        // Predicated region
        $region17: #{tpu_custom_call.1} parent=11 // pred_check
          %p464 = pneg %p126
        $region18: #{tpu_custom_call.1} parent=11 // pred_check_branch
          %466 = sbr.rel (%p464) target = $region20
        $region19: #{tpu_custom_call.1} parent=11 // pred_region
          _
        $region20: #{tpu_custom_call.1} parent=11 // pred_fallthru
          _
        // Predicated region
        $region21: #{tpu_custom_call.1} parent=11 // pred_check
          %p467 = pneg %p147
        $region22: #{tpu_custom_call.1} parent=11 // pred_check_branch
          %469 = sbr.rel (%p467) target = $region24
        $region23: #{tpu_custom_call.1} parent=11 // pred_region
          %s471 = ssub.s32 256, 256
          %472 = vsyncadd [#allocation7], %s471
          %s473 = sshll.u32 [#allocation6], 4
          %s474 = int_to_ptr.vmem [resolvable:$true] %s473
          %479 = dma.hbm_to_vmem [thread:$0]  %s4, 256, %s474, [#allocation7], 64, 64, 4
        $region24: #{tpu_custom_call.1} parent=11 // pred_fallthru
          _
        // Predicated region
        $region25: #{tpu_custom_call.1} parent=11 // pred_check
          %p480 = pneg %p168
        $region26: #{tpu_custom_call.1} parent=11 // pred_check_branch
          %482 = sbr.rel (%p480) target = $region28
        $region27: #{tpu_custom_call.1} parent=11 // pred_region
          _
        $region28: #{tpu_custom_call.1} parent=11 // pred_fallthru
          _
        // Predicated region
        $region29: #{tpu_custom_call.1} parent=11 // pred_check
          %p483 = pneg %p189
        $region30: #{tpu_custom_call.1} parent=11 // pred_check_branch
          %485 = sbr.rel (%p483) target = $region32
        $region31: #{tpu_custom_call.1} parent=11 // pred_region
          %s487 = ssub.s32 256, 256
          %488 = vsyncadd [#allocation7], %s487
          %s489 = sshll.u32 [#allocation8], 4
          %s490 = int_to_ptr.vmem [resolvable:$true] %s489
          %495 = dma.hbm_to_vmem [thread:$0]  %s6, 256, %s490, [#allocation7], 64, 64, 4
        $region32: #{tpu_custom_call.1} parent=11 // pred_fallthru
          _
        // Predicated region
        $region33: #{tpu_custom_call.1} parent=11 // pred_check
          %p496 = pneg %p210
        $region34: #{tpu_custom_call.1} parent=11 // pred_check_branch
          %498 = sbr.rel (%p496) target = $region36
        $region35: #{tpu_custom_call.1} parent=11 // pred_region
          _
        $region36: #{tpu_custom_call.1} parent=11 // pred_fallthru
          _
        // Predicated region
        $region37: #{tpu_custom_call.1} parent=11 // pred_check
          %p499 = pneg %p231
        $region38: #{tpu_custom_call.1} parent=11 // pred_check_branch
          %501 = sbr.rel (%p499) target = $region40
        $region39: #{tpu_custom_call.1} parent=11 // pred_region
          %s503 = ssub.s32 256, 256
          %504 = vsyncadd [#allocation10], %s503
          %s505 = sshll.u32 [#allocation9], 4
          %s506 = int_to_ptr.vmem [resolvable:$true] %s505
          %511 = dma.hbm_to_vmem [thread:$0]  %s8, 256, %s506, [#allocation10], 64, 64, 4
        $region40: #{tpu_custom_call.1} parent=11 // pred_fallthru
          _
        // Predicated region
        $region41: #{tpu_custom_call.1} parent=11 // pred_check
          %p512 = pneg %p252
        $region42: #{tpu_custom_call.1} parent=11 // pred_check_branch
          %514 = sbr.rel (%p512) target = $region44
        $region43: #{tpu_custom_call.1} parent=11 // pred_region
          _
        $region44: #{tpu_custom_call.1} parent=11 // pred_fallthru
          _
        // Predicated region
        $region45: #{tpu_custom_call.1} parent=11 // pred_check
          %p515 = pneg %p273
        $region46: #{tpu_custom_call.1} parent=11 // pred_check_branch
          %517 = sbr.rel (%p515) target = $region48
        $region47: #{tpu_custom_call.1} parent=11 // pred_region
          _
        $region48: #{tpu_custom_call.1} parent=11 // pred_fallthru
          _
        // Predicated region
        $region49: #{tpu_custom_call.1} parent=11 // pred_check
          %p518 = pneg %p294
        $region50: #{tpu_custom_call.1} parent=11 // pred_check_branch
          %520 = sbr.rel (%p518) target = $region52
        $region51: #{tpu_custom_call.1} parent=11 // pred_region
          _
        $region52: #{tpu_custom_call.1} parent=11 // pred_fallthru
          _
        // Predicated region
        $region53: #{tpu_custom_call.1} parent=11 // pred_check
          %p521 = pneg %p315
        $region54: #{tpu_custom_call.1} parent=11 // pred_check_branch
          %523 = sbr.rel (%p521) target = $region56
        $region55: #{tpu_custom_call.1} parent=11 // pred_region
          %s525 = ssub.s32 256, 256
          %526 = vsyncadd [#allocation10], %s525
          %s527 = sshll.u32 [#allocation11], 4
          %s528 = int_to_ptr.vmem [resolvable:$true] %s527
          %533 = dma.hbm_to_vmem [thread:$0]  %s12, 256, %s528, [#allocation10], 64, 64, 4
        $region56: #{tpu_custom_call.1} parent=11 // pred_fallthru
          _
        // Predicated region
        $region57: #{tpu_custom_call.1} parent=11 // pred_check
          %p534 = pneg %p336
        $region58: #{tpu_custom_call.1} parent=11 // pred_check_branch
          %536 = sbr.rel (%p534) target = $region60
        $region59: #{tpu_custom_call.1} parent=11 // pred_region
          _
        $region60: #{tpu_custom_call.1} parent=11 // pred_fallthru
          _
        // Predicated region
        $region61: #{tpu_custom_call.1} parent=11 // pred_check
          %p537 = pneg %p357
        $region62: #{tpu_custom_call.1} parent=11 // pred_check_branch
          %539 = sbr.rel (%p537) target = $region64
        $region63: #{tpu_custom_call.1} parent=11 // pred_region
          _
        $region64: #{tpu_custom_call.1} parent=11 // pred_fallthru
          _
        // Predicated region
        $region65: #{tpu_custom_call.1} parent=11 // pred_check
          %p540 = pneg %p378
        $region66: #{tpu_custom_call.1} parent=11 // pred_check_branch
          %542 = sbr.rel (%p540) target = $region68
        $region67: #{tpu_custom_call.1} parent=11 // pred_region
          _
        $region68: #{tpu_custom_call.1} parent=11 // pred_fallthru
          _
        // Predicated region
        $region69: #{tpu_custom_call.1} parent=11 // pred_check
          %p543 = pneg %p399
        $region70: #{tpu_custom_call.1} parent=11 // pred_check_branch
          %545 = sbr.rel (%p543) target = $region72
        $region71: #{tpu_custom_call.1} parent=11 // pred_region
          _
        $region72: #{tpu_custom_call.1} parent=11 // pred_fallthru
          _
        // Predicated region
        $region73: #{tpu_custom_call.1} parent=11 // pred_check
          %p546 = pneg %p420
        $region74: #{tpu_custom_call.1} parent=11 // pred_check_branch
          %548 = sbr.rel (%p546) target = $region76
        $region75: #{tpu_custom_call.1} parent=11 // pred_region
          _
        $region76: #{tpu_custom_call.1} parent=11 // pred_fallthru
          _
      $region12: #{tpu_custom_call.1} parent=5 // pred_fallthru
        _
      %p549 = scmp.lt.s32.totalorder %s32, 2
      // Predicated region
      $region77: #{tpu_custom_call.1} parent=5 // pred_check
        %p550 = pneg %p549
      $region78: #{tpu_custom_call.1} parent=5 // pred_check_branch
        %552 = sbr.rel (%p550) target = $region80
      $region79: #{tpu_custom_call.1} parent=5 // pred_region
        // Predicated region
        $region81: #{tpu_custom_call.1} parent=79 // pred_check
          %p553 = pneg %p52
        $region82: #{tpu_custom_call.1} parent=79 // pred_check_branch
          %555 = sbr.rel (%p553) target = $region84
        $region83: #{tpu_custom_call.1} parent=79 // pred_region
          %p556 = scmp.lt.s32.totalorder %s32, 1
          %s557 = scalar_select %p556, %s32, 1
          %s558 = smul.addr %s557, 2
          %s559 = smul.addr %s558, 8
          %s560 = scalar_lea.vmem %s0, %s559
        $region84: #{tpu_custom_call.1} parent=79 // pred_fallthru
          _
        // Predicated region
        $region85: #{tpu_custom_call.1} parent=79 // pred_check
          %p561 = pneg %p78
        $region86: #{tpu_custom_call.1} parent=79 // pred_check_branch
          %563 = sbr.rel (%p561) target = $region88
        $region87: #{tpu_custom_call.1} parent=79 // pred_region
          %s564 = sand.u32 %s68, 1
          %s565 = scalar_lea.sflag [#allocation4], %s564
          %s566 = sand.u32 %s68, 1
          %s567 = scalar_lea.vmem [#allocation3], %s566
          %s569 = ssub.s32 16, 16
          %570 = vsyncadd %s565, %s569
          %s571 = smul.addr %s32, 16
          %s572 = scalar_lea.hbm %s1, %s571
          %s574 = sshll.u32 %s567, 4
          %s575 = int_to_ptr.vmem [resolvable:$true] %s574
          %577 = dma.hbm_to_vmem [thread:$0]  %s572, 16, %s575, %s565
        $region88: #{tpu_custom_call.1} parent=79 // pred_fallthru
          _
      $region80: #{tpu_custom_call.1} parent=5 // pred_fallthru
        _
      %p578 = scmp.le.s32.totalorder 1, %s32
      %p579 = scmp.lt.s32.totalorder %s32, 3
      %p580 = pnand %p578, %p579
      %p581 = pneg %p580
      // Predicated region
      $region89: #{tpu_custom_call.1} parent=5 // pred_check
        _
      $region90: #{tpu_custom_call.1} parent=5 // pred_check_branch
        %583 = sbr.rel (%p580) target = $region92
      $region91: #{tpu_custom_call.1} parent=5 // pred_region
        %s584 = ssub.s32 %s32, 1
        %s585 = sand.u32 %s71, 1
        %s586 = scalar_lea.sflag [#allocation4], %s585
        %s587 = sand.u32 %s71, 1
        %s588 = scalar_lea.vmem [#allocation3], %s587
        // Predicated region
        $region93: #{tpu_custom_call.1} parent=91 // pred_check
          %p589 = pneg %p84
        $region94: #{tpu_custom_call.1} parent=91 // pred_check_branch
          %591 = sbr.rel (%p589) target = $region96
        $region95: #{tpu_custom_call.1} parent=91 // pred_region
          %592 = dma.done %s586, 16
        $region96: #{tpu_custom_call.1} parent=91 // pred_fallthru
          _
        // Predicated region
        $region97: #{tpu_custom_call.1} parent=91 // pred_check
          %p593 = pneg %p147
        $region98: #{tpu_custom_call.1} parent=91 // pred_check_branch
          %595 = sbr.rel (%p593) target = $region100
        $region99: #{tpu_custom_call.1} parent=91 // pred_region
          %596 = dma.done [#allocation7], 256
        $region100: #{tpu_custom_call.1} parent=91 // pred_fallthru
          _
        // Predicated region
        $region101: #{tpu_custom_call.1} parent=91 // pred_check
          %p597 = pneg %p189
        $region102: #{tpu_custom_call.1} parent=91 // pred_check_branch
          %599 = sbr.rel (%p597) target = $region104
        $region103: #{tpu_custom_call.1} parent=91 // pred_region
          %600 = dma.done [#allocation7], 256
        $region104: #{tpu_custom_call.1} parent=91 // pred_fallthru
          _
        // Predicated region
        $region105: #{tpu_custom_call.1} parent=91 // pred_check
          %p601 = pneg %p231
        $region106: #{tpu_custom_call.1} parent=91 // pred_check_branch
          %603 = sbr.rel (%p601) target = $region108
        $region107: #{tpu_custom_call.1} parent=91 // pred_region
          %604 = dma.done [#allocation10], 256
        $region108: #{tpu_custom_call.1} parent=91 // pred_fallthru
          _
        // Predicated region
        $region109: #{tpu_custom_call.1} parent=91 // pred_check
          %p605 = pneg %p315
        $region110: #{tpu_custom_call.1} parent=91 // pred_check_branch
          %607 = sbr.rel (%p605) target = $region112
        $region111: #{tpu_custom_call.1} parent=91 // pred_region
          %608 = dma.done [#allocation10], 256
        $region112: #{tpu_custom_call.1} parent=91 // pred_fallthru
          _
        %p609 = scmp.lt.s32.totalorder %s37, 1
        %s610 = scalar_select %p609, %s37, 1
        %s611 = smul.addr %s610, 2
        %s612 = smul.addr %s611, 8
        %s613 = scalar_lea.vmem %s0, %s612
        %p614 = pneg %p58
        %p615 = pneg %p55
        %s616 = sand.u32 %s71, 1
        %s617 = scalar_lea.sflag [#allocation4], %s616
        %s618 = sand.u32 %s71, 1
        %s619 = scalar_lea.vmem [#allocation3], %s618
        %p620 = pneg %p84
        %p621 = pneg %p81
        %p622 = pneg %p105
        %p623 = pneg %p102
        %p624 = pneg %p126
        %p625 = pneg %p123
        %p626 = pneg %p147
        %p627 = pneg %p144
        %p628 = pneg %p168
        %p629 = pneg %p165
        %p630 = pneg %p189
        %p631 = pneg %p186
        %p632 = pneg %p210
        %p633 = pneg %p207
        %p634 = pneg %p231
        %p635 = pneg %p228
        %p636 = pneg %p252
        %p637 = pneg %p249
        %p638 = pneg %p273
        %p639 = pneg %p270
        %p640 = pneg %p294
        %p641 = pneg %p291
        %p642 = pneg %p315
        %p643 = pneg %p312
        %p644 = pneg %p336
        %p645 = pneg %p333
        %p646 = pneg %p357
        %p647 = pneg %p354
        %p648 = pneg %p378
        %p649 = pneg %p375
        %p650 = pneg %p399
        %p651 = pneg %p396
        %p652 = pneg %p420
        %p653 = pneg %p417
        %p654 = pneg %p446
        %p655 = pneg %p443
        %s656 = sand.u32 %s433, 1
        %s657 = scalar_lea.sflag [#allocation5], %s656
        %s658 = sand.u32 %s433, 1
        %s659 = smul.addr %s658, 16
        %s660 = scalar_lea.vmem [#allocation12], %s659
        %p661 = scmp.lt.s32.totalorder %s37, 1
        %s662 = scalar_select %p661, %s37, 1
        %s663 = smul.addr %s662, 2
        %s664 = smul.addr %s663, 8
        %s665 = scalar_lea.vmem %s0, %s664
        %v667 = vld [vmem:[%s665] sm:$0xff]
        %v668 = vld [vmem:[%s665 + $0x8] sm:$0xff]
        %v669 = vpack.c.bf16 %v668, %v667
        %v670 = vld [vmem:[%s2] sm:$0xf]
        %v671 = vld [vmem:[%s2 + $0x4] sm:$0xf]
        %v672 = vld [vmem:[%s2 + $0x8] sm:$0xf]
        %v673 = vld [vmem:[%s2 + $0xc] sm:$0xf]
        %v674 = vld [vmem:[%s3] sm:$0x1]
        %v676 = vlaneseq
        %v677 = vshrl.u32 %v676, 7
        %v678 = vsub.s32 0, %v677
        %v679 = vrot.slane %v674, %v678
        %v685 = vunpack.c.l.b16 %v670
        %v686 = vunpack.c.l.b16 %v671
        %v687 = vunpack.c.l.b16 %v672
        %v688 = vunpack.c.l.b16 %v673
        %v689 = vpack.c.b16 %v686, %v685
        %v690 = vpack.c.b16 %v688, %v687
        %vm693 = vcmask 261120
        %v695 = vsel %vm693, %v669, 0
        %697 = vmatprep.subr.bf16.mxu0 0
        %698 = vmatpush1.bf16.msra.mxu0 0
        %699 = vmatprep.subr.bf16.mxu0 0
        %700 = vmatpush1.bf16.msra.mxu0 0
        %701 = vmatprep.subr.bf16.mxu0 0
        %702 = vmatpush1.bf16.msra.mxu0 0
        %703 = vmatprep.subr.bf16.mxu0 0
        %704 = vmatpush1.bf16.msra.mxu0 0
        %705 = vmatprep.subr.bf16.mxu0 0
        %706 = vmatpush1.bf16.msra.mxu0 0
        %707 = vmatprep.subr.bf16.mxu0 0
        %708 = vmatpush1.bf16.msra.mxu0 0
        %709 = vmatprep.subr.bf16.mxu0 0
        %710 = vmatpush1.bf16.msra.mxu0 %v690
        %711 = vmatprep.subr.bf16.mxu0 0
        %712 = vmatpush1.bf16.msra.mxu0 %v689
        %713 = vmatprep.subr.bf16.mxu0 0
        %714 = vmatpush2.bf16.msra.mxu0 0
        %715 = vmatprep.subr.bf16.mxu0 0
        %716 = vmatpush2.bf16.msra.mxu0 0
        %717 = vmatprep.subr.bf16.mxu0 0
        %718 = vmatpush2.bf16.msra.mxu0 0
        %719 = vmatprep.subr.bf16.mxu0 0
        %720 = vmatpush2.bf16.msra.mxu0 0
        %721 = vmatprep.subr.bf16.mxu0 0
        %722 = vmatpush2.bf16.msra.mxu0 0
        %723 = vmatprep.subr.bf16.mxu0 0
        %724 = vmatpush2.bf16.msra.mxu0 0
        %725 = vmatprep.subr.bf16.mxu0 0
        %726 = vmatpush2.bf16.msra.mxu0 0
        %727 = vmatprep.subr.bf16.mxu0 0
        %728 = vmatpush2.bf16.msra.mxu0 0
        %729 = vmatprep.mubr.bf16.mxu0 0
        %730 = vmatmul.mubr.bf16.gmra.mxu0 %v695
        %v731 = vpop.f32.mrf.mxu0
        %v732 = vadd.f32 %v679, %v731
        %v733 = vpop.f32.mrf.mxu0
        %v734 = vpop.f32.mrf.mxu0
        %v735 = vadd.f32 %v679, %v734
        %v736 = vpop.f32.mrf.mxu0
        %737 = vdwg.mxu0
        %v738 = vld [vmem:[#allocation6] sm:$0xf]
        %v739 = vld [vmem:[#allocation6 + $0x4] sm:$0xf]
        %v740 = vld [vmem:[#allocation6 + $0x8] sm:$0xf]
        %v741 = vld [vmem:[#allocation6 + $0xc] sm:$0xf]
        %v742 = vld [vmem:[%s5] sm:$0x1]
        %v744 = vlaneseq
        %v745 = vshrl.u32 %v744, 7
        %v746 = vsub.s32 0, %v745
        %v747 = vrot.slane %v742, %v746
        %v753 = vunpack.c.l.b16 %v738
        %v754 = vunpack.c.l.b16 %v739
        %v755 = vunpack.c.l.b16 %v740
        %v756 = vunpack.c.l.b16 %v741
        %v757 = vpack.c.b16 %v754, %v753
        %v758 = vpack.c.b16 %v756, %v755
        %761 = vmatprep.subr.bf16.mxu0 0
        %762 = vmatpush1.bf16.msra.mxu0 0
        %763 = vmatprep.subr.bf16.mxu0 0
        %764 = vmatpush1.bf16.msra.mxu0 0
        %765 = vmatprep.subr.bf16.mxu0 0
        %766 = vmatpush1.bf16.msra.mxu0 0
        %767 = vmatprep.subr.bf16.mxu0 0
        %768 = vmatpush1.bf16.msra.mxu0 0
        %769 = vmatprep.subr.bf16.mxu0 0
        %770 = vmatpush1.bf16.msra.mxu0 0
        %771 = vmatprep.subr.bf16.mxu0 0
        %772 = vmatpush1.bf16.msra.mxu0 0
        %773 = vmatprep.subr.bf16.mxu0 0
        %774 = vmatpush1.bf16.msra.mxu0 %v758
        %775 = vmatprep.subr.bf16.mxu0 0
        %776 = vmatpush1.bf16.msra.mxu0 %v757
        %777 = vmatprep.subr.bf16.mxu0 0
        %778 = vmatpush2.bf16.msra.mxu0 0
        %779 = vmatprep.subr.bf16.mxu0 0
        %780 = vmatpush2.bf16.msra.mxu0 0
        %781 = vmatprep.subr.bf16.mxu0 0
        %782 = vmatpush2.bf16.msra.mxu0 0
        %783 = vmatprep.subr.bf16.mxu0 0
        %784 = vmatpush2.bf16.msra.mxu0 0
        %785 = vmatprep.subr.bf16.mxu0 0
        %786 = vmatpush2.bf16.msra.mxu0 0
        %787 = vmatprep.subr.bf16.mxu0 0
        %788 = vmatpush2.bf16.msra.mxu0 0
        %789 = vmatprep.subr.bf16.mxu0 0
        %790 = vmatpush2.bf16.msra.mxu0 0
        %791 = vmatprep.subr.bf16.mxu0 0
        %792 = vmatpush2.bf16.msra.mxu0 0
        %793 = vmatprep.mubr.bf16.mxu0 0
        %794 = vmatmul.mubr.bf16.gmra.mxu0 %v695
        %v795 = vpop.f32.mrf.mxu0
        %v796 = vadd.f32 %v747, %v795
        %v797 = vpop.f32.mrf.mxu0
        %v798 = vpop.f32.mrf.mxu0
        %v799 = vadd.f32 %v747, %v798
        %v800 = vpop.f32.mrf.mxu0
        %801 = vdwg.mxu0
        %v802 = vld [vmem:[#allocation8] sm:$0xf]
        %v803 = vld [vmem:[#allocation8 + $0x4] sm:$0xf]
        %v804 = vld [vmem:[#allocation8 + $0x8] sm:$0xf]
        %v805 = vld [vmem:[#allocation8 + $0xc] sm:$0xf]
        %v806 = vld [vmem:[%s7] sm:$0x1]
        %v808 = vlaneseq
        %v809 = vshrl.u32 %v808, 7
        %v810 = vsub.s32 0, %v809
        %v811 = vrot.slane %v806, %v810
        %v817 = vunpack.c.l.b16 %v802
        %v818 = vunpack.c.l.b16 %v803
        %v819 = vunpack.c.l.b16 %v804
        %v820 = vunpack.c.l.b16 %v805
        %v821 = vpack.c.b16 %v818, %v817
        %v822 = vpack.c.b16 %v820, %v819
        %825 = vmatprep.subr.bf16.mxu0 0
        %826 = vmatpush1.bf16.msra.mxu0 0
        %827 = vmatprep.subr.bf16.mxu0 0
        %828 = vmatpush1.bf16.msra.mxu0 0
        %829 = vmatprep.subr.bf16.mxu0 0
        %830 = vmatpush1.bf16.msra.mxu0 0
        %831 = vmatprep.subr.bf16.mxu0 0
        %832 = vmatpush1.bf16.msra.mxu0 0
        %833 = vmatprep.subr.bf16.mxu0 0
        %834 = vmatpush1.bf16.msra.mxu0 0
        %835 = vmatprep.subr.bf16.mxu0 0
        %836 = vmatpush1.bf16.msra.mxu0 0
        %837 = vmatprep.subr.bf16.mxu0 0
        %838 = vmatpush1.bf16.msra.mxu0 %v822
        %839 = vmatprep.subr.bf16.mxu0 0
        %840 = vmatpush1.bf16.msra.mxu0 %v821
        %841 = vmatprep.subr.bf16.mxu0 0
        %842 = vmatpush2.bf16.msra.mxu0 0
        %843 = vmatprep.subr.bf16.mxu0 0
        %844 = vmatpush2.bf16.msra.mxu0 0
        %845 = vmatprep.subr.bf16.mxu0 0
        %846 = vmatpush2.bf16.msra.mxu0 0
        %847 = vmatprep.subr.bf16.mxu0 0
        %848 = vmatpush2.bf16.msra.mxu0 0
        %849 = vmatprep.subr.bf16.mxu0 0
        %850 = vmatpush2.bf16.msra.mxu0 0
        %851 = vmatprep.subr.bf16.mxu0 0
        %852 = vmatpush2.bf16.msra.mxu0 0
        %853 = vmatprep.subr.bf16.mxu0 0
        %854 = vmatpush2.bf16.msra.mxu0 0
        %855 = vmatprep.subr.bf16.mxu0 0
        %856 = vmatpush2.bf16.msra.mxu0 0
        %857 = vmatprep.mubr.bf16.mxu0 0
        %858 = vmatmul.mubr.bf16.gmra.mxu0 %v695
        %v859 = vpop.f32.mrf.mxu0
        %v860 = vadd.f32 %v811, %v859
        %v861 = vpop.f32.mrf.mxu0
        %v862 = vpop.f32.mrf.mxu0
        %v863 = vadd.f32 %v811, %v862
        %v864 = vpop.f32.mrf.mxu0
        %865 = vdwg.mxu0
        %v866 = vpack.c.bf16 %v735, %v732
        %v867 = vpack.c.bf16 %v799, %v796
        %v868 = vpack.c.bf16 %v863, %v860
        %v869 = vld [vmem:[%s588] sm:$0x1]
        %v871 = vlaneseq
        %v872 = vshrl.u32 %v871, 7
        %v873 = vsub.s32 0, %v872
        %v874 = vrot.slane %v869, %v873
        %vm876 = vcmask 64512
        %v878 = vsel %vm876, %v866, 0
        %v881 = vsel %vm876, %v867, 0
        %883 = vmatprep.subr.bf16.mxu0 0
        %884 = vmatpush1.bf16.xpose.msra.mxu0 0
        %885 = vmatprep.subr.bf16.mxu0 0
        %886 = vmatpush1.bf16.xpose.msra.mxu0 0
        %887 = vmatprep.subr.bf16.mxu0 0
        %888 = vmatpush1.bf16.xpose.msra.mxu0 0
        %889 = vmatprep.subr.bf16.mxu0 0
        %890 = vmatpush1.bf16.xpose.msra.mxu0 0
        %891 = vmatprep.subr.bf16.mxu0 0
        %892 = vmatpush1.bf16.xpose.msra.mxu0 0
        %893 = vmatprep.subr.bf16.mxu0 0
        %894 = vmatpush1.bf16.xpose.msra.mxu0 0
        %895 = vmatprep.subr.bf16.mxu0 0
        %896 = vmatpush1.bf16.xpose.msra.mxu0 0
        %897 = vmatprep.subr.bf16.mxu0 0
        %898 = vmatpush1.bf16.xpose.msra.mxu0 %v881
        %899 = vmatprep.subr.bf16.mxu0 0
        %900 = vmatpush2.bf16.xpose.msra.mxu0 0
        %901 = vmatprep.subr.bf16.mxu0 0
        %902 = vmatpush2.bf16.xpose.msra.mxu0 0
        %903 = vmatprep.subr.bf16.mxu0 0
        %904 = vmatpush2.bf16.xpose.msra.mxu0 0
        %905 = vmatprep.subr.bf16.mxu0 0
        %906 = vmatpush2.bf16.xpose.msra.mxu0 0
        %907 = vmatprep.subr.bf16.mxu0 0
        %908 = vmatpush2.bf16.xpose.msra.mxu0 0
        %909 = vmatprep.subr.bf16.mxu0 0
        %910 = vmatpush2.bf16.xpose.msra.mxu0 0
        %911 = vmatprep.subr.bf16.mxu0 0
        %912 = vmatpush2.bf16.xpose.msra.mxu0 0
        %913 = vmatprep.subr.bf16.mxu0 0
        %914 = vmatpush2.bf16.xpose.msra.mxu0 0
        %915 = vmatprep.mubr.bf16.mxu0 0
        %916 = vmatmul.mubr.bf16.gmra.mxu0 %v878
        %v917 = vpop.f32.mrf.mxu0
        %v918 = vadd.f32 %v874, %v917
        %v919 = vpop.f32.mrf.mxu0
        %v920 = vpop.f32.mrf.mxu0
        %v921 = vadd.f32 %v874, %v920
        %v922 = vpop.f32.mrf.mxu0
        %923 = vdwg.mxu0
        %vm924 = vcmask 130048
        %v925 = vsel %vm924, %v918, -inf
        %926 = vmax.xlane.f32.xlu0 %v925
        %v927 = vpop.xlane.xlu0 %926
        %v928 = vsel %vm924, %v921, -inf
        %929 = vmax.xlane.f32.xlu0 %v928
        %v930 = vpop.xlane.xlu0 %929
        %v931 = vsub.f32 %v918, %v927
        %v932 = vsub.f32 %v921, %v930
        %v933 = vmul.f32 %v931, 1.442695
        %v934 = vpow.pop %v933
        %v935 = vmul.f32 %v932, 1.442695
        %v936 = vpow.pop %v935
        %v937 = vsel %vm924, %v934, 0.0
        %938 = vadd.xlane.f32.xlu0 %v937
        %v939 = vpop.xlane.xlu0 %938
        %v940 = vsel %vm924, %v936, 0.0
        %941 = vadd.xlane.f32.xlu0 %v940
        %v942 = vpop.xlane.xlu0 %941
        %v943 = vrcp.pop %v939
        %v944 = vrcp.pop %v942
        %v945 = vmul.f32 %v934, %v943
        %v946 = vmul.f32 %v936, %v944
        %v947 = vpack.c.bf16 %v946, %v945
        %v949 = vsel %vm924, %v947, 0
        %951 = vmatprep.subr.bf16.mxu0 0
        %952 = vmatpush1.bf16.msra.mxu0 0
        %953 = vmatprep.subr.bf16.mxu0 0
        %954 = vmatpush1.bf16.msra.mxu0 0
        %955 = vmatprep.subr.bf16.mxu0 0
        %956 = vmatpush1.bf16.msra.mxu0 0
        %957 = vmatprep.subr.bf16.mxu0 0
        %958 = vmatpush1.bf16.msra.mxu0 0
        %959 = vmatprep.subr.bf16.mxu0 0
        %960 = vmatpush1.bf16.msra.mxu0 0
        %961 = vmatprep.subr.bf16.mxu0 0
        %962 = vmatpush1.bf16.msra.mxu0 0
        %963 = vmatprep.subr.bf16.mxu0 0
        %964 = vmatpush1.bf16.msra.mxu0 0
        %965 = vmatprep.subr.bf16.mxu0 0
        %966 = vmatpush1.bf16.msra.mxu0 %v868
        %967 = vmatprep.subr.bf16.mxu0 0
        %968 = vmatpush2.bf16.msra.mxu0 0
        %969 = vmatprep.subr.bf16.mxu0 0
        %970 = vmatpush2.bf16.msra.mxu0 0
        %971 = vmatprep.subr.bf16.mxu0 0
        %972 = vmatpush2.bf16.msra.mxu0 0
        %973 = vmatprep.subr.bf16.mxu0 0
        %974 = vmatpush2.bf16.msra.mxu0 0
        %975 = vmatprep.subr.bf16.mxu0 0
        %976 = vmatpush2.bf16.msra.mxu0 0
        %977 = vmatprep.subr.bf16.mxu0 0
        %978 = vmatpush2.bf16.msra.mxu0 0
        %979 = vmatprep.subr.bf16.mxu0 0
        %980 = vmatpush2.bf16.msra.mxu0 0
        %981 = vmatprep.subr.bf16.mxu0 0
        %982 = vmatpush2.bf16.msra.mxu0 0
        %983 = vmatprep.mubr.bf16.mxu0 0
        %984 = vmatmul.mubr.bf16.gmra.mxu0 %v949
        %v985 = vpop.f32.mrf.mxu0
        %v986 = vadd.f32 0.0, %v985
        %v987 = vpop.f32.mrf.mxu0
        %v988 = vpop.f32.mrf.mxu0
        %v989 = vadd.f32 0.0, %v988
        %v990 = vpop.f32.mrf.mxu0
        %991 = vdwg.mxu0
        %v992 = vpack.c.bf16 %v989, %v986
        %v994 = vunpack.c.l.b16 %v992
        %v995 = vunpack.c.h.b16 %v992
        %v996 = vpack.c.b16 %v994, %v994
        %v997 = vpack.c.b16 %v995, %v995
        %vm1000 = vcmask 60416
        %1001 = vst.msk [vmem:[#allocation2] sm:$0xf] %vm1000, %v996
        %1002 = vst.msk [vmem:[#allocation2 + $0x4] sm:$0xf] %vm1000, %v997
        %1004 = vrot.lane.b32.xlu0 %v866, 120
        %v1005 = vpop.permute.xlu0 %1004
        %1007 = vrot.lane.b32.xlu0 %v867, 120
        %v1008 = vpop.permute.xlu0 %1007
        %v1010 = vsel %vm876, %v1005, 0
        %v1013 = vsel %vm876, %v1008, 0
        %1015 = vmatprep.subr.bf16.mxu0 0
        %1016 = vmatpush1.bf16.xpose.msra.mxu0 0
        %1017 = vmatprep.subr.bf16.mxu0 0
        %1018 = vmatpush1.bf16.xpose.msra.mxu0 0
        %1019 = vmatprep.subr.bf16.mxu0 0
        %1020 = vmatpush1.bf16.xpose.msra.mxu0 0
        %1021 = vmatprep.subr.bf16.mxu0 0
        %1022 = vmatpush1.bf16.xpose.msra.mxu0 0
        %1023 = vmatprep.subr.bf16.mxu0 0
        %1024 = vmatpush1.bf16.xpose.msra.mxu0 0
        %1025 = vmatprep.subr.bf16.mxu0 0
        %1026 = vmatpush1.bf16.xpose.msra.mxu0 0
        %1027 = vmatprep.subr.bf16.mxu0 0
        %1028 = vmatpush1.bf16.xpose.msra.mxu0 0
        %1029 = vmatprep.subr.bf16.mxu0 0
        %1030 = vmatpush1.bf16.xpose.msra.mxu0 %v1013
        %1031 = vmatprep.subr.bf16.mxu0 0
        %1032 = vmatpush2.bf16.xpose.msra.mxu0 0
        %1033 = vmatprep.subr.bf16.mxu0 0
        %1034 = vmatpush2.bf16.xpose.msra.mxu0 0
        %1035 = vmatprep.subr.bf16.mxu0 0
        %1036 = vmatpush2.bf16.xpose.msra.mxu0 0
        %1037 = vmatprep.subr.bf16.mxu0 0
        %1038 = vmatpush2.bf16.xpose.msra.mxu0 0
        %1039 = vmatprep.subr.bf16.mxu0 0
        %1040 = vmatpush2.bf16.xpose.msra.mxu0 0
        %1041 = vmatprep.subr.bf16.mxu0 0
        %1042 = vmatpush2.bf16.xpose.msra.mxu0 0
        %1043 = vmatprep.subr.bf16.mxu0 0
        %1044 = vmatpush2.bf16.xpose.msra.mxu0 0
        %1045 = vmatprep.subr.bf16.mxu0 0
        %1046 = vmatpush2.bf16.xpose.msra.mxu0 0
        %1047 = vmatprep.mubr.bf16.mxu0 0
        %1048 = vmatmul.mubr.bf16.gmra.mxu0 %v1010
        %v1049 = vpop.f32.mrf.mxu0
        %v1050 = vadd.f32 %v874, %v1049
        %v1051 = vpop.f32.mrf.mxu0
        %v1052 = vpop.f32.mrf.mxu0
        %v1053 = vadd.f32 %v874, %v1052
        %v1054 = vpop.f32.mrf.mxu0
        %1055 = vdwg.mxu0
        %v1056 = vsel %vm924, %v1050, -inf
        %1057 = vmax.xlane.f32.xlu0 %v1056
        %v1058 = vpop.xlane.xlu0 %1057
        %v1059 = vsel %vm924, %v1053, -inf
        %1060 = vmax.xlane.f32.xlu0 %v1059
        %v1061 = vpop.xlane.xlu0 %1060
        %v1062 = vsub.f32 %v1050, %v1058
        %v1063 = vsub.f32 %v1053, %v1061
        %v1064 = vmul.f32 %v1062, 1.442695
        %v1065 = vpow.pop %v1064
        %v1066 = vmul.f32 %v1063, 1.442695
        %v1067 = vpow.pop %v1066
        %v1068 = vsel %vm924, %v1065, 0.0
        %1069 = vadd.xlane.f32.xlu0 %v1068
        %v1070 = vpop.xlane.xlu0 %1069
        %v1071 = vsel %vm924, %v1067, 0.0
        %1072 = vadd.xlane.f32.xlu0 %v1071
        %v1073 = vpop.xlane.xlu0 %1072
        %v1074 = vrcp.pop %v1070
        %v1075 = vrcp.pop %v1073
        %v1076 = vmul.f32 %v1065, %v1074
        %v1077 = vmul.f32 %v1067, %v1075
        %v1078 = vpack.c.bf16 %v1077, %v1076
        %1080 = vrot.lane.b32.xlu0 %v868, 120
        %v1081 = vpop.permute.xlu0 %1080
        %v1084 = vsel %vm924, %v1078, 0
        %1086 = vmatprep.subr.bf16.mxu0 0
        %1087 = vmatpush1.bf16.msra.mxu0 0
        %1088 = vmatprep.subr.bf16.mxu0 0
        %1089 = vmatpush1.bf16.msra.mxu0 0
        %1090 = vmatprep.subr.bf16.mxu0 0
        %1091 = vmatpush1.bf16.msra.mxu0 0
        %1092 = vmatprep.subr.bf16.mxu0 0
        %1093 = vmatpush1.bf16.msra.mxu0 0
        %1094 = vmatprep.subr.bf16.mxu0 0
        %1095 = vmatpush1.bf16.msra.mxu0 0
        %1096 = vmatprep.subr.bf16.mxu0 0
        %1097 = vmatpush1.bf16.msra.mxu0 0
        %1098 = vmatprep.subr.bf16.mxu0 0
        %1099 = vmatpush1.bf16.msra.mxu0 0
        %1100 = vmatprep.subr.bf16.mxu0 0
        %1101 = vmatpush1.bf16.msra.mxu0 %v1081
        %1102 = vmatprep.subr.bf16.mxu0 0
        %1103 = vmatpush2.bf16.msra.mxu0 0
        %1104 = vmatprep.subr.bf16.mxu0 0
        %1105 = vmatpush2.bf16.msra.mxu0 0
        %1106 = vmatprep.subr.bf16.mxu0 0
        %1107 = vmatpush2.bf16.msra.mxu0 0
        %1108 = vmatprep.subr.bf16.mxu0 0
        %1109 = vmatpush2.bf16.msra.mxu0 0
        %1110 = vmatprep.subr.bf16.mxu0 0
        %1111 = vmatpush2.bf16.msra.mxu0 0
        %1112 = vmatprep.subr.bf16.mxu0 0
        %1113 = vmatpush2.bf16.msra.mxu0 0
        %1114 = vmatprep.subr.bf16.mxu0 0
        %1115 = vmatpush2.bf16.msra.mxu0 0
        %1116 = vmatprep.subr.bf16.mxu0 0
        %1117 = vmatpush2.bf16.msra.mxu0 0
        %1118 = vmatprep.mubr.bf16.mxu0 0
        %1119 = vmatmul.mubr.bf16.gmra.mxu0 %v1084
        %v1120 = vpop.f32.mrf.mxu0
        %v1121 = vadd.f32 0.0, %v1120
        %v1122 = vpop.f32.mrf.mxu0
        %v1123 = vpop.f32.mrf.mxu0
        %v1124 = vadd.f32 0.0, %v1123
        %v1125 = vpop.f32.mrf.mxu0
        %1126 = vdwg.mxu0
        %v1127 = vpack.c.bf16 %v1124, %v1121
        %v1129 = vunpack.c.l.b16 %v1127
        %v1130 = vunpack.c.h.b16 %v1127
        %v1131 = vpack.c.b16 %v1129, %v1129
        %v1132 = vpack.c.b16 %v1130, %v1130
        %1133 = vrot.lane.b32.xlu0 %v1131, 8
        %v1134 = vpop.permute.xlu0 %1133
        %1135 = vrot.lane.b32.xlu0 %v1132, 8
        %v1136 = vpop.permute.xlu0 %1135
        %vm1139 = vcmask 126016
        %1140 = vst.msk [vmem:[#allocation2] sm:$0xf] %vm1139, %v1134
        %1141 = vst.msk [vmem:[#allocation2 + $0x4] sm:$0xf] %vm1139, %v1136
        %1142 = vrot.lane.b32.xlu0 %v866, 112
        %v1143 = vpop.permute.xlu0 %1142
        %1144 = vrot.lane.b32.xlu0 %v867, 112
        %v1145 = vpop.permute.xlu0 %1144
        %v1147 = vsel %vm876, %v1143, 0
        %v1150 = vsel %vm876, %v1145, 0
        %1152 = vmatprep.subr.bf16.mxu0 0
        %1153 = vmatpush1.bf16.xpose.msra.mxu0 0
        %1154 = vmatprep.subr.bf16.mxu0 0
        %1155 = vmatpush1.bf16.xpose.msra.mxu0 0
        %1156 = vmatprep.subr.bf16.mxu0 0
        %1157 = vmatpush1.bf16.xpose.msra.mxu0 0
        %1158 = vmatprep.subr.bf16.mxu0 0
        %1159 = vmatpush1.bf16.xpose.msra.mxu0 0
        %1160 = vmatprep.subr.bf16.mxu0 0
        %1161 = vmatpush1.bf16.xpose.msra.mxu0 0
        %1162 = vmatprep.subr.bf16.mxu0 0
        %1163 = vmatpush1.bf16.xpose.msra.mxu0 0
        %1164 = vmatprep.subr.bf16.mxu0 0
        %1165 = vmatpush1.bf16.xpose.msra.mxu0 0
        %1166 = vmatprep.subr.bf16.mxu0 0
        %1167 = vmatpush1.bf16.xpose.msra.mxu0 %v1150
        %1168 = vmatprep.subr.bf16.mxu0 0
        %1169 = vmatpush2.bf16.xpose.msra.mxu0 0
        %1170 = vmatprep.subr.bf16.mxu0 0
        %1171 = vmatpush2.bf16.xpose.msra.mxu0 0
        %1172 = vmatprep.subr.bf16.mxu0 0
        %1173 = vmatpush2.bf16.xpose.msra.mxu0 0
        %1174 = vmatprep.subr.bf16.mxu0 0
        %1175 = vmatpush2.bf16.xpose.msra.mxu0 0
        %1176 = vmatprep.subr.bf16.mxu0 0
        %1177 = vmatpush2.bf16.xpose.msra.mxu0 0
        %1178 = vmatprep.subr.bf16.mxu0 0
        %1179 = vmatpush2.bf16.xpose.msra.mxu0 0
        %1180 = vmatprep.subr.bf16.mxu0 0
        %1181 = vmatpush2.bf16.xpose.msra.mxu0 0
        %1182 = vmatprep.subr.bf16.mxu0 0
        %1183 = vmatpush2.bf16.xpose.msra.mxu0 0
        %1184 = vmatprep.mubr.bf16.mxu0 0
        %1185 = vmatmul.mubr.bf16.gmra.mxu0 %v1147
        %v1186 = vpop.f32.mrf.mxu0
        %v1187 = vadd.f32 %v874, %v1186
        %v1188 = vpop.f32.mrf.mxu0
        %v1189 = vpop.f32.mrf.mxu0
        %v1190 = vadd.f32 %v874, %v1189
        %v1191 = vpop.f32.mrf.mxu0
        %1192 = vdwg.mxu0
        %v1193 = vsel %vm924, %v1187, -inf
        %1194 = vmax.xlane.f32.xlu0 %v1193
        %v1195 = vpop.xlane.xlu0 %1194
        %v1196 = vsel %vm924, %v1190, -inf
        %1197 = vmax.xlane.f32.xlu0 %v1196
        %v1198 = vpop.xlane.xlu0 %1197
        %v1199 = vsub.f32 %v1187, %v1195
        %v1200 = vsub.f32 %v1190, %v1198
        %v1201 = vmul.f32 %v1199, 1.442695
        %v1202 = vpow.pop %v1201
        %v1203 = vmul.f32 %v1200, 1.442695
        %v1204 = vpow.pop %v1203
        %v1205 = vsel %vm924, %v1202, 0.0
        %1206 = vadd.xlane.f32.xlu0 %v1205
        %v1207 = vpop.xlane.xlu0 %1206
        %v1208 = vsel %vm924, %v1204, 0.0
        %1209 = vadd.xlane.f32.xlu0 %v1208
        %v1210 = vpop.xlane.xlu0 %1209
        %v1211 = vrcp.pop %v1207
        %v1212 = vrcp.pop %v1210
        %v1213 = vmul.f32 %v1202, %v1211
        %v1214 = vmul.f32 %v1204, %v1212
        %v1215 = vpack.c.bf16 %v1214, %v1213
        %1216 = vrot.lane.b32.xlu0 %v868, 112
        %v1217 = vpop.permute.xlu0 %1216
        %v1220 = vsel %vm924, %v1215, 0
        %1222 = vmatprep.subr.bf16.mxu0 0
        %1223 = vmatpush1.bf16.msra.mxu0 0
        %1224 = vmatprep.subr.bf16.mxu0 0
        %1225 = vmatpush1.bf16.msra.mxu0 0
        %1226 = vmatprep.subr.bf16.mxu0 0
        %1227 = vmatpush1.bf16.msra.mxu0 0
        %1228 = vmatprep.subr.bf16.mxu0 0
        %1229 = vmatpush1.bf16.msra.mxu0 0
        %1230 = vmatprep.subr.bf16.mxu0 0
        %1231 = vmatpush1.bf16.msra.mxu0 0
        %1232 = vmatprep.subr.bf16.mxu0 0
        %1233 = vmatpush1.bf16.msra.mxu0 0
        %1234 = vmatprep.subr.bf16.mxu0 0
        %1235 = vmatpush1.bf16.msra.mxu0 0
        %1236 = vmatprep.subr.bf16.mxu0 0
        %1237 = vmatpush1.bf16.msra.mxu0 %v1217
        %1238 = vmatprep.subr.bf16.mxu0 0
        %1239 = vmatpush2.bf16.msra.mxu0 0
        %1240 = vmatprep.subr.bf16.mxu0 0
        %1241 = vmatpush2.bf16.msra.mxu0 0
        %1242 = vmatprep.subr.bf16.mxu0 0
        %1243 = vmatpush2.bf16.msra.mxu0 0
        %1244 = vmatprep.subr.bf16.mxu0 0
        %1245 = vmatpush2.bf16.msra.mxu0 0
        %1246 = vmatprep.subr.bf16.mxu0 0
        %1247 = vmatpush2.bf16.msra.mxu0 0
        %1248 = vmatprep.subr.bf16.mxu0 0
        %1249 = vmatpush2.bf16.msra.mxu0 0
        %1250 = vmatprep.subr.bf16.mxu0 0
        %1251 = vmatpush2.bf16.msra.mxu0 0
        %1252 = vmatprep.subr.bf16.mxu0 0
        %1253 = vmatpush2.bf16.msra.mxu0 0
        %1254 = vmatprep.mubr.bf16.mxu0 0
        %1255 = vmatmul.mubr.bf16.gmra.mxu0 %v1220
        %v1256 = vpop.f32.mrf.mxu0
        %v1257 = vadd.f32 0.0, %v1256
        %v1258 = vpop.f32.mrf.mxu0
        %v1259 = vpop.f32.mrf.mxu0
        %v1260 = vadd.f32 0.0, %v1259
        %v1261 = vpop.f32.mrf.mxu0
        %1262 = vdwg.mxu0
        %v1263 = vpack.c.bf16 %v1260, %v1257
        %v1265 = vunpack.c.l.b16 %v1263
        %v1266 = vunpack.c.h.b16 %v1263
        %v1267 = vpack.c.b16 %v1265, %v1265
        %v1268 = vpack.c.b16 %v1266, %v1266
        %1269 = vrot.lane.b32.xlu0 %v1267, 16
        %v1270 = vpop.permute.xlu0 %1269
        %1271 = vrot.lane.b32.xlu0 %v1268, 16
        %v1272 = vpop.permute.xlu0 %1271
        %vm1275 = vcmask 191616
        %1276 = vst.msk [vmem:[#allocation2] sm:$0xf] %vm1275, %v1270
        %1277 = vst.msk [vmem:[#allocation2 + $0x4] sm:$0xf] %vm1275, %v1272
        %1278 = vrot.lane.b32.xlu0 %v866, 104
        %v1279 = vpop.permute.xlu0 %1278
        %1280 = vrot.lane.b32.xlu0 %v867, 104
        %v1281 = vpop.permute.xlu0 %1280
        %v1283 = vsel %vm876, %v1279, 0
        %v1286 = vsel %vm876, %v1281, 0
        %1288 = vmatprep.subr.bf16.mxu0 0
        %1289 = vmatpush1.bf16.xpose.msra.mxu0 0
        %1290 = vmatprep.subr.bf16.mxu0 0
        %1291 = vmatpush1.bf16.xpose.msra.mxu0 0
        %1292 = vmatprep.subr.bf16.mxu0 0
        %1293 = vmatpush1.bf16.xpose.msra.mxu0 0
        %1294 = vmatprep.subr.bf16.mxu0 0
        %1295 = vmatpush1.bf16.xpose.msra.mxu0 0
        %1296 = vmatprep.subr.bf16.mxu0 0
        %1297 = vmatpush1.bf16.xpose.msra.mxu0 0
        %1298 = vmatprep.subr.bf16.mxu0 0
        %1299 = vmatpush1.bf16.xpose.msra.mxu0 0
        %1300 = vmatprep.subr.bf16.mxu0 0
        %1301 = vmatpush1.bf16.xpose.msra.mxu0 0
        %1302 = vmatprep.subr.bf16.mxu0 0
        %1303 = vmatpush1.bf16.xpose.msra.mxu0 %v1286
        %1304 = vmatprep.subr.bf16.mxu0 0
        %1305 = vmatpush2.bf16.xpose.msra.mxu0 0
        %1306 = vmatprep.subr.bf16.mxu0 0
        %1307 = vmatpush2.bf16.xpose.msra.mxu0 0
        %1308 = vmatprep.subr.bf16.mxu0 0
        %1309 = vmatpush2.bf16.xpose.msra.mxu0 0
        %1310 = vmatprep.subr.bf16.mxu0 0
        %1311 = vmatpush2.bf16.xpose.msra.mxu0 0
        %1312 = vmatprep.subr.bf16.mxu0 0
        %1313 = vmatpush2.bf16.xpose.msra.mxu0 0
        %1314 = vmatprep.subr.bf16.mxu0 0
        %1315 = vmatpush2.bf16.xpose.msra.mxu0 0
        %1316 = vmatprep.subr.bf16.mxu0 0
        %1317 = vmatpush2.bf16.xpose.msra.mxu0 0
        %1318 = vmatprep.subr.bf16.mxu0 0
        %1319 = vmatpush2.bf16.xpose.msra.mxu0 0
        %1320 = vmatprep.mubr.bf16.mxu0 0
        %1321 = vmatmul.mubr.bf16.gmra.mxu0 %v1283
        %v1322 = vpop.f32.mrf.mxu0
        %v1323 = vadd.f32 %v874, %v1322
        %v1324 = vpop.f32.mrf.mxu0
        %v1325 = vpop.f32.mrf.mxu0
        %v1326 = vadd.f32 %v874, %v1325
        %v1327 = vpop.f32.mrf.mxu0
        %1328 = vdwg.mxu0
        %v1329 = vsel %vm924, %v1323, -inf
        %1330 = vmax.xlane.f32.xlu0 %v1329
        %v1331 = vpop.xlane.xlu0 %1330
        %v1332 = vsel %vm924, %v1326, -inf
        %1333 = vmax.xlane.f32.xlu0 %v1332
        %v1334 = vpop.xlane.xlu0 %1333
        %v1335 = vsub.f32 %v1323, %v1331
        %v1336 = vsub.f32 %v1326, %v1334
        %v1337 = vmul.f32 %v1335, 1.442695
        %v1338 = vpow.pop %v1337
        %v1339 = vmul.f32 %v1336, 1.442695
        %v1340 = vpow.pop %v1339
        %v1341 = vsel %vm924, %v1338, 0.0
        %1342 = vadd.xlane.f32.xlu0 %v1341
        %v1343 = vpop.xlane.xlu0 %1342
        %v1344 = vsel %vm924, %v1340, 0.0
        %1345 = vadd.xlane.f32.xlu0 %v1344
        %v1346 = vpop.xlane.xlu0 %1345
        %v1347 = vrcp.pop %v1343
        %v1348 = vrcp.pop %v1346
        %v1349 = vmul.f32 %v1338, %v1347
        %v1350 = vmul.f32 %v1340, %v1348
        %v1351 = vpack.c.bf16 %v1350, %v1349
        %1352 = vrot.lane.b32.xlu0 %v868, 104
        %v1353 = vpop.permute.xlu0 %1352
        %v1356 = vsel %vm924, %v1351, 0
        %1358 = vmatprep.subr.bf16.mxu0 0
        %1359 = vmatpush1.bf16.msra.mxu0 0
        %1360 = vmatprep.subr.bf16.mxu0 0
        %1361 = vmatpush1.bf16.msra.mxu0 0
        %1362 = vmatprep.subr.bf16.mxu0 0
        %1363 = vmatpush1.bf16.msra.mxu0 0
        %1364 = vmatprep.subr.bf16.mxu0 0
        %1365 = vmatpush1.bf16.msra.mxu0 0
        %1366 = vmatprep.subr.bf16.mxu0 0
        %1367 = vmatpush1.bf16.msra.mxu0 0
        %1368 = vmatprep.subr.bf16.mxu0 0
        %1369 = vmatpush1.bf16.msra.mxu0 0
        %1370 = vmatprep.subr.bf16.mxu0 0
        %1371 = vmatpush1.bf16.msra.mxu0 0
        %1372 = vmatprep.subr.bf16.mxu0 0
        %1373 = vmatpush1.bf16.msra.mxu0 %v1353
        %1374 = vmatprep.subr.bf16.mxu0 0
        %1375 = vmatpush2.bf16.msra.mxu0 0
        %1376 = vmatprep.subr.bf16.mxu0 0
        %1377 = vmatpush2.bf16.msra.mxu0 0
        %1378 = vmatprep.subr.bf16.mxu0 0
        %1379 = vmatpush2.bf16.msra.mxu0 0
        %1380 = vmatprep.subr.bf16.mxu0 0
        %1381 = vmatpush2.bf16.msra.mxu0 0
        %1382 = vmatprep.subr.bf16.mxu0 0
        %1383 = vmatpush2.bf16.msra.mxu0 0
        %1384 = vmatprep.subr.bf16.mxu0 0
        %1385 = vmatpush2.bf16.msra.mxu0 0
        %1386 = vmatprep.subr.bf16.mxu0 0
        %1387 = vmatpush2.bf16.msra.mxu0 0
        %1388 = vmatprep.subr.bf16.mxu0 0
        %1389 = vmatpush2.bf16.msra.mxu0 0
        %1390 = vmatprep.mubr.bf16.mxu0 0
        %1391 = vmatmul.mubr.bf16.gmra.mxu0 %v1356
        %v1392 = vpop.f32.mrf.mxu0
        %v1393 = vadd.f32 0.0, %v1392
        %v1394 = vpop.f32.mrf.mxu0
        %v1395 = vpop.f32.mrf.mxu0
        %v1396 = vadd.f32 0.0, %v1395
        %v1397 = vpop.f32.mrf.mxu0
        %1398 = vdwg.mxu0
        %v1399 = vpack.c.bf16 %v1396, %v1393
        %v1401 = vunpack.c.l.b16 %v1399
        %v1402 = vunpack.c.h.b16 %v1399
        %v1403 = vpack.c.b16 %v1401, %v1401
        %v1404 = vpack.c.b16 %v1402, %v1402
        %1405 = vrot.lane.b32.xlu0 %v1403, 24
        %v1406 = vpop.permute.xlu0 %1405
        %1407 = vrot.lane.b32.xlu0 %v1404, 24
        %v1408 = vpop.permute.xlu0 %1407
        %vm1411 = vcmask 257216
        %1412 = vst.msk [vmem:[#allocation2] sm:$0xf] %vm1411, %v1406
        %1413 = vst.msk [vmem:[#allocation2 + $0x4] sm:$0xf] %vm1411, %v1408
        %v1414 = vld [vmem:[#allocation2] sm:$0xf]
        %v1415 = vld [vmem:[#allocation2 + $0x4] sm:$0xf]
        %v1416 = vld [vmem:[#allocation9] sm:$0xf]
        %v1417 = vld [vmem:[#allocation9 + $0x4] sm:$0xf]
        %v1418 = vld [vmem:[#allocation9 + $0x8] sm:$0xf]
        %v1419 = vld [vmem:[#allocation9 + $0xc] sm:$0xf]
        %v1420 = vld [vmem:[%s9] sm:$0x1]
        %v1422 = vlaneseq
        %v1423 = vshrl.u32 %v1422, 7
        %v1424 = vsub.s32 0, %v1423
        %v1425 = vrot.slane %v1420, %v1424
        %v1429 = vunpack.c.l.b16 %v1414
        %v1430 = vunpack.c.l.b16 %v1415
        %v1431 = vpack.c.b16 %v1430, %v1429
        %v1436 = vunpack.c.l.b16 %v1416
        %v1437 = vunpack.c.l.b16 %v1417
        %v1438 = vunpack.c.l.b16 %v1418
        %v1439 = vunpack.c.l.b16 %v1419
        %v1440 = vpack.c.b16 %v1437, %v1436
        %v1441 = vpack.c.b16 %v1439, %v1438
        %v1445 = vsel %vm693, %v1431, 0
        %1447 = vmatprep.subr.bf16.mxu0 0
        %1448 = vmatpush1.bf16.msra.mxu0 0
        %1449 = vmatprep.subr.bf16.mxu0 0
        %1450 = vmatpush1.bf16.msra.mxu0 0
        %1451 = vmatprep.subr.bf16.mxu0 0
        %1452 = vmatpush1.bf16.msra.mxu0 0
        %1453 = vmatprep.subr.bf16.mxu0 0
        %1454 = vmatpush1.bf16.msra.mxu0 0
        %1455 = vmatprep.subr.bf16.mxu0 0
        %1456 = vmatpush1.bf16.msra.mxu0 0
        %1457 = vmatprep.subr.bf16.mxu0 0
        %1458 = vmatpush1.bf16.msra.mxu0 0
        %1459 = vmatprep.subr.bf16.mxu0 0
        %1460 = vmatpush1.bf16.msra.mxu0 %v1441
        %1461 = vmatprep.subr.bf16.mxu0 0
        %1462 = vmatpush1.bf16.msra.mxu0 %v1440
        %1463 = vmatprep.subr.bf16.mxu0 0
        %1464 = vmatpush2.bf16.msra.mxu0 0
        %1465 = vmatprep.subr.bf16.mxu0 0
        %1466 = vmatpush2.bf16.msra.mxu0 0
        %1467 = vmatprep.subr.bf16.mxu0 0
        %1468 = vmatpush2.bf16.msra.mxu0 0
        %1469 = vmatprep.subr.bf16.mxu0 0
        %1470 = vmatpush2.bf16.msra.mxu0 0
        %1471 = vmatprep.subr.bf16.mxu0 0
        %1472 = vmatpush2.bf16.msra.mxu0 0
        %1473 = vmatprep.subr.bf16.mxu0 0
        %1474 = vmatpush2.bf16.msra.mxu0 0
        %1475 = vmatprep.subr.bf16.mxu0 0
        %1476 = vmatpush2.bf16.msra.mxu0 0
        %1477 = vmatprep.subr.bf16.mxu0 0
        %1478 = vmatpush2.bf16.msra.mxu0 0
        %1479 = vmatprep.mubr.bf16.mxu0 0
        %1480 = vmatmul.mubr.bf16.gmra.mxu0 %v1445
        %v1481 = vpop.f32.mrf.mxu0
        %v1482 = vadd.f32 %v1425, %v1481
        %v1483 = vpop.f32.mrf.mxu0
        %v1484 = vpop.f32.mrf.mxu0
        %v1485 = vadd.f32 %v1425, %v1484
        %v1486 = vpop.f32.mrf.mxu0
        %1487 = vdwg.mxu0
        %v1488 = vadd.f32 %v1482, %v667
        %v1489 = vadd.f32 %v1485, %v668
        %v1490 = vld [vmem:[%s10] sm:$0x1]
        %v1491 = vld [vmem:[%s11] sm:$0x1]
        %v1492 = vsel %vm693, %v1488, 0.0
        %1493 = vadd.xlane.f32.xlu0 %v1492
        %v1494 = vpop.xlane.xlu0 %1493
        %v1495 = vsel %vm693, %v1489, 0.0
        %1496 = vadd.xlane.f32.xlu0 %v1495
        %v1497 = vpop.xlane.xlu0 %1496
        %v1498 = vrcp.pop 32.0
        %v1499 = vmul.f32 %v1494, %v1498
        %v1500 = vmul.f32 %v1497, %v1498
        %v1501 = vsub.f32 %v1488, %v1499
        %v1502 = vsub.f32 %v1489, %v1500
        %v1503 = vmul.f32 %v1501, %v1501
        %v1504 = vmul.f32 %v1502, %v1502
        %v1505 = vsel %vm693, %v1503, 0.0
        %1506 = vadd.xlane.f32.xlu0 %v1505
        %v1507 = vpop.xlane.xlu0 %1506
        %v1508 = vsel %vm693, %v1504, 0.0
        %1509 = vadd.xlane.f32.xlu0 %v1508
        %v1510 = vpop.xlane.xlu0 %1509
        %v1511 = vmul.f32 %v1507, %v1498
        %v1512 = vmul.f32 %v1510, %v1498
        %v1513 = vadd.f32 %v1511, 1e-05
        %v1514 = vadd.f32 %v1512, 1e-05
        %v1515 = vrsqrt.pop %v1513
        %v1516 = vrsqrt.pop %v1514
        %v1517 = vmul.f32 %v1501, %v1515
        %v1518 = vmul.f32 %v1502, %v1516
        %v1520 = vlaneseq
        %v1521 = vshrl.u32 %v1520, 7
        %v1522 = vsub.s32 0, %v1521
        %v1523 = vrot.slane %v1490, %v1522
        %v1525 = vmul.f32 %v1517, %v1523
        %v1526 = vmul.f32 %v1518, %v1523
        %v1528 = vlaneseq
        %v1529 = vshrl.u32 %v1528, 7
        %v1530 = vsub.s32 0, %v1529
        %v1531 = vrot.slane %v1491, %v1530
        %v1533 = vadd.f32 %v1525, %v1531
        %v1534 = vadd.f32 %v1526, %v1531
        %v1535 = vpack.c.bf16 %v1534, %v1533
        %v1536 = vld [vmem:[#allocation11] sm:$0xf]
        %v1537 = vld [vmem:[#allocation11 + $0x4] sm:$0xf]
        %v1538 = vld [vmem:[#allocation11 + $0x8] sm:$0xf]
        %v1539 = vld [vmem:[#allocation11 + $0xc] sm:$0xf]
        %v1540 = vld [vmem:[%s13] sm:$0x1]
        %v1542 = vlaneseq
        %v1543 = vshrl.u32 %v1542, 7
        %v1544 = vsub.s32 0, %v1543
        %v1545 = vrot.slane %v1540, %v1544
        %v1551 = vunpack.c.l.b16 %v1536
        %v1552 = vunpack.c.l.b16 %v1537
        %v1553 = vunpack.c.l.b16 %v1538
        %v1554 = vunpack.c.l.b16 %v1539
        %v1555 = vpack.c.b16 %v1552, %v1551
        %v1556 = vpack.c.b16 %v1554, %v1553
        %v1560 = vsel %vm693, %v1535, 0
        %1562 = vmatprep.subr.bf16.mxu0 0
        %1563 = vmatpush1.bf16.msra.mxu0 0
        %1564 = vmatprep.subr.bf16.mxu0 0
        %1565 = vmatpush1.bf16.msra.mxu0 0
        %1566 = vmatprep.subr.bf16.mxu0 0
        %1567 = vmatpush1.bf16.msra.mxu0 0
        %1568 = vmatprep.subr.bf16.mxu0 0
        %1569 = vmatpush1.bf16.msra.mxu0 0
        %1570 = vmatprep.subr.bf16.mxu0 0
        %1571 = vmatpush1.bf16.msra.mxu0 0
        %1572 = vmatprep.subr.bf16.mxu0 0
        %1573 = vmatpush1.bf16.msra.mxu0 0
        %1574 = vmatprep.subr.bf16.mxu0 0
        %1575 = vmatpush1.bf16.msra.mxu0 %v1556
        %1576 = vmatprep.subr.bf16.mxu0 0
        %1577 = vmatpush1.bf16.msra.mxu0 %v1555
        %1578 = vmatprep.subr.bf16.mxu0 0
        %1579 = vmatpush2.bf16.msra.mxu0 0
        %1580 = vmatprep.subr.bf16.mxu0 0
        %1581 = vmatpush2.bf16.msra.mxu0 0
        %1582 = vmatprep.subr.bf16.mxu0 0
        %1583 = vmatpush2.bf16.msra.mxu0 0
        %1584 = vmatprep.subr.bf16.mxu0 0
        %1585 = vmatpush2.bf16.msra.mxu0 0
        %1586 = vmatprep.subr.bf16.mxu0 0
        %1587 = vmatpush2.bf16.msra.mxu0 0
        %1588 = vmatprep.subr.bf16.mxu0 0
        %1589 = vmatpush2.bf16.msra.mxu0 0
        %1590 = vmatprep.subr.bf16.mxu0 0
        %1591 = vmatpush2.bf16.msra.mxu0 0
        %1592 = vmatprep.subr.bf16.mxu0 0
        %1593 = vmatpush2.bf16.msra.mxu0 0
        %1594 = vmatprep.mubr.bf16.mxu0 0
        %1595 = vmatmul.mubr.bf16.gmra.mxu0 %v1560
        %v1596 = vpop.f32.mrf.mxu0
        %v1597 = vadd.f32 %v1545, %v1596
        %v1598 = vpop.f32.mrf.mxu0
        %v1599 = vpop.f32.mrf.mxu0
        %v1600 = vadd.f32 %v1545, %v1599
        %v1601 = vpop.f32.mrf.mxu0
        %1602 = vdwg.mxu0
        %v1603 = vmul.f32 %v1597, 0.5
        %v1604 = vmul.f32 %v1600, 0.5
        %v1605 = vmul.f32 %v1597, 0.70710677
        %v1606 = vmul.f32 %v1600, 0.70710677
        %v1607 = verf.f32.pop %v1605
        %v1608 = verf.f32.pop %v1606
        %v1609 = vadd.f32 %v1607, 1.0
        %v1610 = vadd.f32 %v1608, 1.0
        %v1611 = vmul.f32 %v1603, %v1609
        %v1612 = vmul.f32 %v1604, %v1610
        %v1613 = vpack.c.bf16 %v1612, %v1611
        %v1614 = vld [vmem:[%s14] sm:$0xf]
        %v1615 = vld [vmem:[%s14 + $0x4] sm:$0xf]
        %v1616 = vld [vmem:[%s14 + $0x8] sm:$0xf]
        %v1617 = vld [vmem:[%s14 + $0xc] sm:$0xf]
        %v1618 = vld [vmem:[%s14 + $0x10] sm:$0xf]
        %v1619 = vld [vmem:[%s14 + $0x14] sm:$0xf]
        %v1620 = vld [vmem:[%s14 + $0x18] sm:$0xf]
        %v1621 = vld [vmem:[%s14 + $0x1c] sm:$0xf]
        %v1622 = vld [vmem:[%s15] sm:$0x1]
        %v1624 = vlaneseq
        %v1625 = vshrl.u32 %v1624, 7
        %v1626 = vsub.s32 0, %v1625
        %v1627 = vrot.slane %v1622, %v1626
        %v1637 = vunpack.c.l.b16 %v1614
        %v1638 = vunpack.c.l.b16 %v1615
        %v1639 = vunpack.c.l.b16 %v1616
        %v1640 = vunpack.c.l.b16 %v1617
        %v1641 = vunpack.c.l.b16 %v1618
        %v1642 = vunpack.c.l.b16 %v1619
        %v1643 = vunpack.c.l.b16 %v1620
        %v1644 = vunpack.c.l.b16 %v1621
        %v1645 = vpack.c.b16 %v1638, %v1637
        %v1646 = vpack.c.b16 %v1640, %v1639
        %v1647 = vpack.c.b16 %v1642, %v1641
        %v1648 = vpack.c.b16 %v1644, %v1643
        %vm1653 = vcmask 523264
        %v1655 = vsel %vm1653, %v1613, 0
        %1657 = vmatprep.subr.bf16.mxu0 0
        %1658 = vmatpush1.bf16.msra.mxu0 0
        %1659 = vmatprep.subr.bf16.mxu0 0
        %1660 = vmatpush1.bf16.msra.mxu0 0
        %1661 = vmatprep.subr.bf16.mxu0 0
        %1662 = vmatpush1.bf16.msra.mxu0 0
        %1663 = vmatprep.subr.bf16.mxu0 0
        %1664 = vmatpush1.bf16.msra.mxu0 0
        %1665 = vmatprep.subr.bf16.mxu0 0
        %1666 = vmatpush1.bf16.msra.mxu0 %v1648
        %1667 = vmatprep.subr.bf16.mxu0 0
        %1668 = vmatpush1.bf16.msra.mxu0 %v1647
        %1669 = vmatprep.subr.bf16.mxu0 0
        %1670 = vmatpush1.bf16.msra.mxu0 %v1646
        %1671 = vmatprep.subr.bf16.mxu0 0
        %1672 = vmatpush1.bf16.msra.mxu0 %v1645
        %1673 = vmatprep.subr.bf16.mxu0 0
        %1674 = vmatpush2.bf16.msra.mxu0 0
        %1675 = vmatprep.subr.bf16.mxu0 0
        %1676 = vmatpush2.bf16.msra.mxu0 0
        %1677 = vmatprep.subr.bf16.mxu0 0
        %1678 = vmatpush2.bf16.msra.mxu0 0
        %1679 = vmatprep.subr.bf16.mxu0 0
        %1680 = vmatpush2.bf16.msra.mxu0 0
        %1681 = vmatprep.subr.bf16.mxu0 0
        %1682 = vmatpush2.bf16.msra.mxu0 0
        %1683 = vmatprep.subr.bf16.mxu0 0
        %1684 = vmatpush2.bf16.msra.mxu0 0
        %1685 = vmatprep.subr.bf16.mxu0 0
        %1686 = vmatpush2.bf16.msra.mxu0 0
        %1687 = vmatprep.subr.bf16.mxu0 0
        %1688 = vmatpush2.bf16.msra.mxu0 0
        %1689 = vmatprep.mubr.bf16.mxu0 0
        %1690 = vmatmul.mubr.bf16.gmra.mxu0 %v1655
        %v1691 = vpop.f32.mrf.mxu0
        %v1692 = vadd.f32 %v1627, %v1691
        %v1693 = vpop.f32.mrf.mxu0
        %v1694 = vpop.f32.mrf.mxu0
        %v1695 = vadd.f32 %v1627, %v1694
        %v1696 = vpop.f32.mrf.mxu0
        %1697 = vdwg.mxu0
        %v1698 = vadd.f32 %v1692, %v1533
        %v1699 = vadd.f32 %v1695, %v1534
        %v1700 = vld [vmem:[%s16] sm:$0x1]
        %v1701 = vld [vmem:[%s17] sm:$0x1]
        %v1702 = vsel %vm693, %v1698, 0.0
        %1703 = vadd.xlane.f32.xlu0 %v1702
        %v1704 = vpop.xlane.xlu0 %1703
        %v1705 = vsel %vm693, %v1699, 0.0
        %1706 = vadd.xlane.f32.xlu0 %v1705
        %v1707 = vpop.xlane.xlu0 %1706
        %v1708 = vmul.f32 %v1704, %v1498
        %v1709 = vmul.f32 %v1707, %v1498
        %v1710 = vsub.f32 %v1698, %v1708
        %v1711 = vsub.f32 %v1699, %v1709
        %v1712 = vmul.f32 %v1710, %v1710
        %v1713 = vmul.f32 %v1711, %v1711
        %v1714 = vsel %vm693, %v1712, 0.0
        %1715 = vadd.xlane.f32.xlu0 %v1714
        %v1716 = vpop.xlane.xlu0 %1715
        %v1717 = vsel %vm693, %v1713, 0.0
        %1718 = vadd.xlane.f32.xlu0 %v1717
        %v1719 = vpop.xlane.xlu0 %1718
        %v1720 = vmul.f32 %v1716, %v1498
        %v1721 = vmul.f32 %v1719, %v1498
        %v1722 = vadd.f32 %v1720, 1e-05
        %v1723 = vadd.f32 %v1721, 1e-05
        %v1724 = vrsqrt.pop %v1722
        %v1725 = vrsqrt.pop %v1723
        %v1726 = vmul.f32 %v1710, %v1724
        %v1727 = vmul.f32 %v1711, %v1725
        %v1729 = vlaneseq
        %v1730 = vshrl.u32 %v1729, 7
        %v1731 = vsub.s32 0, %v1730
        %v1732 = vrot.slane %v1700, %v1731
        %v1734 = vmul.f32 %v1726, %v1732
        %v1735 = vmul.f32 %v1727, %v1732
        %v1737 = vlaneseq
        %v1738 = vshrl.u32 %v1737, 7
        %v1739 = vsub.s32 0, %v1738
        %v1740 = vrot.slane %v1701, %v1739
        %v1742 = vadd.f32 %v1734, %v1740
        %v1743 = vadd.f32 %v1735, %v1740
        %1744 = vst.msk [vmem:[%s660] sm:$0xff] %vm693, %v1742
        %1745 = vst.msk [vmem:[%s660 + $0x8] sm:$0xff] %vm693, %v1743
        %s1746 = sand.u32 %s433, 1
        %s1747 = scalar_lea.sflag [#allocation5], %s1746
        %s1748 = sand.u32 %s433, 1
        %s1749 = smul.addr %s1748, 16
        %s1750 = scalar_lea.vmem [#allocation12], %s1749
        // Predicated region
        $region113: #{tpu_custom_call.1} parent=91 // pred_check
          %p1751 = pneg %p443
        $region114: #{tpu_custom_call.1} parent=91 // pred_check_branch
          %1753 = sbr.rel (%p1751) target = $region116
        $region115: #{tpu_custom_call.1} parent=91 // pred_region
          %s1755 = ssub.s32 256, 256
          %1756 = vsyncadd %s1747, %s1755
          %s1757 = smul.addr %s37, 2
          %s1758 = smul.addr %s1757, 128
          %s1759 = scalar_lea.hbm %s18, %s1758
          %s1760 = sshll.u32 %s1750, 4
          %s1761 = int_to_ptr.vmem [resolvable:$true] %s1760
          %1766 = dma.vmem_to_hbm [thread:$0]  %s1761, 256, %s1759, %s1747, 128, 128, 8
        $region116: #{tpu_custom_call.1} parent=91 // pred_fallthru
          _
      $region92: #{tpu_custom_call.1} parent=5 // pred_fallthru
        _
      %p1767 = scmp.le.s32.totalorder 2, %s32
      // Predicated region
      $region117: #{tpu_custom_call.1} parent=5 // pred_check
        %p1768 = pneg %p1767
      $region118: #{tpu_custom_call.1} parent=5 // pred_check_branch
        %1770 = sbr.rel (%p1768) target = $region120
      $region119: #{tpu_custom_call.1} parent=5 // pred_region
        %s1771 = ssub.s32 %s32, 2
        // Predicated region
        $region121: #{tpu_custom_call.1} parent=119 // pred_check
          %p1772 = pneg %p449
        $region122: #{tpu_custom_call.1} parent=119 // pred_check_branch
          %1774 = sbr.rel (%p1772) target = $region124
        $region123: #{tpu_custom_call.1} parent=119 // pred_region
          %s1775 = sand.u32 %s434, 1
          %s1776 = scalar_lea.sflag [#allocation5], %s1775
          %s1777 = sand.u32 %s434, 1
          %s1778 = smul.addr %s1777, 16
          %s1779 = scalar_lea.vmem [#allocation12], %s1778
          %1780 = dma.done %s1776, 256
        $region124: #{tpu_custom_call.1} parent=119 // pred_fallthru
          _
      $region120: #{tpu_custom_call.1} parent=5 // pred_fallthru
        _
    $region6: #{tpu_custom_call.1} parent=1 // loop_footer
      %s36 = sadd.s32 1, %s32
    $region7: #{tpu_custom_call.1} parent=1 // loop_footer_branch
      %31 = sbr.rel target = $region3
    $region8: #{tpu_custom_call.1} parent=1 // loop_exit
      _
    %1781 = vsyncpa [#allocation4], 1
    %s1782 = scalar_lea.sflag [#allocation4], 1
    %1783 = vsyncpa %s1782, 1
    %1784 = vsyncpa [#allocation7], 1
    %1785 = vsyncpa [#allocation10], 1
    %1786 = vsyncpa [#allocation5], 1
    %s1787 = scalar_lea.sflag [#allocation5], 1
    %1788 = vsyncpa %s1787, 1

</llo_original>
